<compile_context>
chip_gen: v7x
topology: tpu7x:2x2x1
jax: 0.10.0
libtpu: 0.0.40
codegen_flags: <defaults>
</compile_context>

<pallas_src>
import functools
import math

import jax
import jax.numpy as jnp
import numpy as np
from jax import lax
from jax.experimental import pallas as pl
from jax.experimental.pallas import tpu as pltpu

NPAD = 128  # lane-dense width for the 2-class prediction head


# --------------------------------------------------------------------------- #
# generation-aware tuning helpers (wrapper-side, pure Python)
# --------------------------------------------------------------------------- #
def _device_kind():
    try:
        return jax.devices()[0].device_kind.lower()
    except Exception:
        return ""


def _is_v7x(kind):
    return ("v7" in kind) or ("7x" in kind)


def _vmem_limit_bytes(kind):
    # 128 MiB physical VMEM on v5e/v5p/v6e -> allow ~96 MiB scoped; 64 MiB/TC on
    # v7x -> cap at 48 MiB; conservative (previously proven) 32 MiB otherwise.
    if _is_v7x(kind):
        return 48 * 1024 * 1024
    if ("v5" in kind) or ("v6" in kind):
        return 96 * 1024 * 1024
    return 32 * 1024 * 1024


def _dimension_semantics(kind, grid_len):
    # v7x has 2 TensorCores; only core-parallel semantics actually shard the
    # grid across them.  Gate on an even grid so both cores get equal work.
    if _is_v7x(kind) and grid_len >= 2 and grid_len % 2 == 0:
        return (getattr(pltpu, "CORE_PARALLEL", "parallel"),)
    return ("parallel",)


def _pick_batch_block(B, T, target_rows=256):
    """Largest divisor of B such that bb*T stays within the per-step row target."""
    bb = 1
    for cand in range(1, B + 1):
        if B % cand == 0 and cand * T <= max(T, target_rows):
            bb = cand
    return bb


# --------------------------------------------------------------------------- #
# kernel
# --------------------------------------------------------------------------- #
def _layer_norm(x, g, b, eps=1e-5):
    mu = jnp.mean(x, axis=-1, keepdims=True)
    xc = x - mu
    var = jnp.mean(xc * xc, axis=-1, keepdims=True)
    return xc * lax.rsqrt(var + eps) * g + b


def _predict_layer_kernel(
        enc_ref, kpb_ref, hmask_ref, lw_ref,
        wqkv_ref, bqkv_ref, wo_ref, bo_ref, g1_ref, be1_ref,
        w1_ref, b1_ref, w2_ref, b2_ref, g2_ref, be2_ref,
        wp_ref, bp_ref,
        outx_ref, pred_ref, attw_ref,
        ctx_scr,
        *, num_heads, src_len, seq_len, batch_blk):
    L = enc_ref.shape[0]
    C = enc_ref.shape[2]
    T = seq_len
    H = num_heads
    BB = batch_blk
    R = T - src_len
    f32 = jnp.float32
    bf16 = jnp.bfloat16

    # --- 1) softmax-weighted sum of encoder layer states ---------------------
    # encoder states are streamed as bf16 (halves the dominant HBM read); the
    # sum is accumulated in f32.  The softmax over the L scalars is parameter-
    # only glue done in the wrapper; the weights arrive pre-normalised in SMEM.
    x = enc_ref[0].astype(f32) * lw_ref[0, 0]
    for l in range(1, L):
        x = x + enc_ref[l].astype(f32) * lw_ref[0, l]               # (BB*T, C)
    residual = x

    # --- 2) multi-head self-attention ----------------------------------------
    # fused QKV projection over ALL BB*T rows at once (one big bf16 MXU matmul;
    # the query scale 1/sqrt(Dh) is pre-folded into wq/bq in the wrapper).
    qkv = jnp.dot(x.astype(bf16), wqkv_ref[...],
                  preferred_element_type=f32) + bqkv_ref[...]       # (BB*T, 3C)
    q2 = qkv[:, :C]
    k2 = qkv[:, C:2 * C]
    v2 = qkv[:, 2 * C:]

    # head-channel selector, precomputed once in the wrapper (bf16 0/1)
    hmask = hmask_ref[...]                                          # (H, 1, C)

    # Attention is batch-local: static loop over the BB batch rows in this
    # block.  Heads are packed block-diagonally so each batch row needs only
    # two MXU matmuls with a full-C contraction.  q.k^T uses dot_general
    # contracting dim 1 of both operands (MXU's native transposed-RHS path).
    for b in range(BB):
        r0 = b * T
        q2b = q2[r0:r0 + T, :]
        k2b = k2[r0:r0 + T, :]
        v2b = v2[r0:r0 + T, :]

        # bf16 mask-select directly (no f32 (H,T,C) intermediate)
        q_sel = (q2b.astype(bf16)[None, :, :] * hmask).reshape(H * T, C)
        s = lax.dot_general(q_sel, k2b.astype(bf16),
                            (((1,), (1,)), ((), ())),
                            preferred_element_type=f32)             # (H*T, T)
        # additive key-padding bias (0 / -1e30).
        # TODO(synk): a query row whose keys are ALL padding produces a uniform
        # softmax here, whereas PyTorch's -inf masking would yield NaN for it.
        s = s + kpb_ref[b]

        m = jnp.max(s, axis=-1, keepdims=True)
        e = jnp.exp(s - m)
        p = e * pl.reciprocal(jnp.sum(e, axis=-1, keepdims=True), approx=True)

        # head-averaged attention weights (exported), one contiguous (T,T) store
        attw_ref[b, :, :] = jnp.sum(p.reshape(H, T, T), axis=0) * (1.0 / H)

        # downcast p right after the normalize; bf16 PV matmul, f32 accumulate
        pb = p.astype(bf16)
        ctx_rep = jnp.dot(pb, v2b.astype(bf16),
                          preferred_element_type=f32)               # (H*T, C)
        # TODO(synk): the "fold mask into V + relayout p to (T,H*T)" variant
        # needs a second-minor transpose of p; kept the proven mask-and-sum.
        ctx_scr[r0:r0 + T, :] = jnp.sum(
            ctx_rep.reshape(H, T, C) * hmask, axis=0)               # (T, C)

    a = jnp.dot(ctx_scr[...].astype(bf16), wo_ref[...],
                preferred_element_type=f32) + bo_ref[...]
    x = _layer_norm(residual + a, g1_ref[...], be1_ref[...])        # post-norm

    # --- 3) feed-forward (all BB*T rows at once) ------------------------------
    res2 = x
    h1 = jnp.maximum(
        jnp.dot(x.astype(bf16), w1_ref[...], preferred_element_type=f32)
        + b1_ref[...], 0.0)
    y = jnp.dot(h1.astype(bf16), w2_ref[...],
                preferred_element_type=f32) + b2_ref[...]
    x = _layer_norm(res2 + y, g2_ref[...], be2_ref[...])
    outx_ref[...] = x                                               # (BB*T, C)

    # --- 4) prediction head (wp padded to 128 output lanes -> unmasked stores)
    # one big matmul over all rows, retrieve rows sliced out per batch row.
    pred_all = jnp.dot(x.astype(bf16), wp_ref[...],
                       preferred_element_type=f32) + bp_ref[...]    # (BB*T, 128)
    for b in range(BB):
        pred_ref[b * R:(b + 1) * R, :] = \
            pred_all[b * T + src_len:(b + 1) * T, :]


# --------------------------------------------------------------------------- #
# wrapper
# --------------------------------------------------------------------------- #
def transformer_predict_layer(encoder_states, src_tokens, retrieve_tokens, params,
                              *, num_heads, pad_id):
    """encoder_states: (L, T, B, C) float32 (PyTorch seq-first convention).
    The original forward also takes `concat_x`, which it immediately overwrites,
    so it is not an input here."""
    L, T, B, C = encoder_states.shape
    S = src_tokens.shape[1]
    R = retrieve_tokens.shape[1]
    assert T == S + R
    assert T % 8 == 0 and R % 8 == 0, "block shapes must be sublane-aligned"
    H = num_heads
    Dh = C // H
    scale = Dh ** -0.5
    F = params["w1"].shape[1]
    f32, bf16 = jnp.float32, jnp.bfloat16

    kind = _device_kind()
    BB = _pick_batch_block(B, T)        # batch rows per grid step
    grid_len = B // BB

    # ---- parameter-only glue (wrapper) --------------------------------------
    # fused QKV with the query scale folded into the Q weights/bias; bf16 weights
    wqkv = jnp.concatenate([params["wq"] * scale, params["wk"], params["wv"]],
                           axis=1).astype(bf16)                     # (C, 3C)
    bqkv = jnp.concatenate([params["bq"] * scale, params["bk"], params["bv"]],
                           axis=1).astype(f32)                      # (1, 3C)
    wo = params["wo"].astype(bf16)
    w1 = params["w1"].astype(bf16)
    w2 = params["w2"].astype(bf16)
    wp_pad = jnp.zeros((C, NPAD), f32).at[:, :2].set(params["wp"]).astype(bf16)
    bp_pad = jnp.zeros((1, NPAD), f32).at[:, :2].set(params["bp"])

    lw = jax.nn.softmax(params["layer_weight"].astype(f32)).reshape(1, L)

    # encoder states: batch-major + bf16 stream; the cast fuses into the
    # transpose copy and the (L,B,T,C)->(L,B*T,C) reshape is free.
    enc = jnp.transpose(encoder_states, (0, 2, 1, 3)) \
             .reshape(L, B * T, C).astype(bf16)

    concat_tokens = jnp.concatenate([src_tokens, retrieve_tokens], axis=1)
    kpb = jnp.where(concat_tokens == pad_id, -1e30, 0.0).astype(f32) \
             .reshape(B, 1, T)

    # head-channel selector precomputed once (review: no per-step iota rebuild)
    hmask = (jnp.arange(C)[None, :] // Dh ==
             jnp.arange(H)[:, None]).astype(bf16).reshape(H, 1, C)

    kernel = functools.partial(_predict_layer_kernel, num_heads=H, src_len=S,
                               seq_len=T, batch_blk=BB)

    def full_spec(shape):
        # constant-index blocks: never re-fetched across the grid.
        # TODO(synk): pipeline_mode=pl.Buffered(1) would single-buffer these
        # weights (halves their VMEM footprint on v7x at production C/F).
        return pl.BlockSpec(shape, lambda i: (0,) * len(shape))

    in_specs = [
        pl.BlockSpec((L, BB * T, C), lambda i: (0, i, 0)),          # encoder states
        pl.BlockSpec((BB, 1, T), lambda i: (i, 0, 0)),              # padding bias
        full_spec((H, 1, C)),                                       # head mask
        pl.BlockSpec((1, L), lambda i: (0, 0),
                     memory_space=pltpu.MemorySpace.SMEM),          # layer weights
        full_spec((C, 3 * C)), full_spec((1, 3 * C)),               # wqkv, bqkv
        full_spec((C, C)), full_spec((1, C)),                       # wo, bo
        full_spec((1, C)), full_spec((1, C)),                       # ln1 g, b
        full_spec((C, F)), full_spec((1, F)),                       # w1, b1
        full_spec((F, C)), full_spec((1, C)),                       # w2, b2
        full_spec((1, C)), full_spec((1, C)),                       # ln2 g, b
        full_spec((C, NPAD)), full_spec((1, NPAD)),                 # wp, bp (padded)
    ]
    out_specs = (
        pl.BlockSpec((BB * T, C), lambda i: (i, 0)),                # x, (B*T, C)
        pl.BlockSpec((BB * R, NPAD), lambda i: (i, 0)),             # pred, (B*R, 128)
        pl.BlockSpec((BB, T, T), lambda i: (i, 0, 0)),              # attn weights
    )
    out_shapes = (
        jax.ShapeDtypeStruct((B * T, C), f32),
        jax.ShapeDtypeStruct((B * R, NPAD), f32),
        jax.ShapeDtypeStruct((B, T, T), f32),
    )

    x_flat, pred_flat, attn_w = pl.pallas_call(
        kernel,
        grid=(grid_len,),
        in_specs=in_specs,
        out_specs=out_specs,
        out_shape=out_shapes,
        scratch_shapes=[pltpu.VMEM((BB * T, C), f32)],              # ctx assembly
        compiler_params=pltpu.CompilerParams(
            dimension_semantics=_dimension_semantics(kind, grid_len),
            vmem_limit_bytes=_vmem_limit_bytes(kind)),
    )(enc, kpb, hmask, lw,
      wqkv, bqkv, wo, params["bo"], params["ln1_g"], params["ln1_b"],
      w1, params["b1"], w2, params["b2"], params["ln2_g"], params["ln2_b"],
      wp_pad, bp_pad)

    # TODO(synk): x is written (B,T,C)-major and transposed here; writing (T,B,C)
    # directly from the kernel would need a (BB, C) trailing block, which breaks
    # the (8,128) rule for general BB.  outx/attw lane widths are < 128 only at
    # toy C/T (production C,T >= 128 give lane-dense stores already).
    concat_x = jnp.transpose(x_flat.reshape(B, T, C), (1, 0, 2))    # (T, B, C)
    predict_result = pred_flat.reshape(B, R, NPAD)[:, :, :2]        # (B, R, 2)
    # argmax over 2 classes + token fill: trivial elementwise -> wrapper
    save_bool = predict_result[..., 1] > predict_result[..., 0]
    predict_save_index = save_bool.astype(jnp.uint8)                # (B, R)
    new_retrieve_tokens = jnp.where(save_bool, retrieve_tokens, pad_id)
    return (concat_x, predict_save_index, predict_result,
            new_retrieve_tokens, attn_w)


# --------------------------------------------------------------------------- #
# parameters + plain-JAX reference (validation only)
# --------------------------------------------------------------------------- #
def init_params(key, C, F, L):
    ks = jax.random.split(key, 5)

    def xavier(k, out_f, in_f):
        bound = math.sqrt(6.0 / (in_f + out_f))
        return jax.random.uniform(k, (out_f, in_f), jnp.float32, -bound, bound)

    in_proj = xavier(ks[0], 3 * C, C)           # fairseq MHA in_proj_weight
    wq, wk, wv = in_proj[:C], in_proj[C:2 * C], in_proj[2 * C:]
    wo = xavier(ks[1], C, C)
    w1 = xavier(ks[2], F, C)
    w2 = xavier(ks[3], C, F)
    wp = xavier(ks[4], 2, C)
    z = lambda n: jnp.zeros((1, n), jnp.float32)
    return dict(
        layer_weight=jnp.zeros((L,), jnp.float32),            # Weight(L, value=0)
        wq=wq.T, bq=z(C), wk=wk.T, bk=z(C), wv=wv.T, bv=z(C),
        wo=wo.T, bo=z(C),
        ln1_g=jnp.ones((1, C), jnp.float32), ln1_b=z(C),
        w1=w1.T, b1=z(F), w2=w2.T, b2=z(C),
        ln2_g=jnp.ones((1, C), jnp.float32), ln2_b=z(C),
        wp=wp.T, bp=z(2),
    )


def reference(encoder_states, src_tokens, retrieve_tokens, params, *, num_heads, pad_id):
    """Plain-JAX (f32) reference of the same forward, for validation."""
    L, T, B, C = encoder_states.shape
    S = src_tokens.shape[1]
    H = num_heads
    Dh = C // H
    lw = jax.nn.softmax(params["layer_weight"])
    x = jnp.einsum("ltbc,l->tbc", encoder_states, lw)
    concat_tok = jnp.concatenate([src_tokens, retrieve_tokens], axis=1)
    kpm = concat_tok == pad_id

    def lnf(t, g, b):
        mu = t.mean(-1, keepdims=True)
        var = ((t - mu) ** 2).mean(-1, keepdims=True)
        return (t - mu) / jnp.sqrt(var + 1e-5) * g.reshape(-1) + b.reshape(-1)

    residual = x
    q = (x @ params["wq"] + params["bq"].reshape(-1)) * (Dh ** -0.5)
    k = x @ params["wk"] + params["bk"].reshape(-1)
    v = x @ params["wv"] + params["bv"].reshape(-1)

    def split_heads(t):
        return jnp.transpose(t.reshape(T, B, H, Dh), (1, 2, 0, 3))

    qh, kh, vh = split_heads(q), split_heads(k), split_heads(v)
    s = jnp.einsum("bhqd,bhkd->bhqk", qh, kh)
    s = jnp.where(kpm[:, None, None, :], -jnp.inf, s)
    p = jax.nn.softmax(s, axis=-1)
    attn = jnp.einsum("bhqk,bhkd->bhqd", p, vh)
    attn = jnp.transpose(attn, (2, 0, 1, 3)).reshape(T, B, C)
    attn_w = p.mean(axis=1)
    out = attn @ params["wo"] + params["bo"].reshape(-1)
    x = lnf(residual + out, params["ln1_g"], params["ln1_b"])
    res2 = x
    h1 = jax.nn.relu(x @ params["w1"] + params["b1"].reshape(-1))
    y = h1 @ params["w2"] + params["b2"].reshape(-1)
    x = lnf(res2 + y, params["ln2_g"], params["ln2_b"])
    xr = x[S:]
    pred = xr @ params["wp"] + params["bp"].reshape(-1)        # (R, B, 2)
    save = (pred[..., 1] > pred[..., 0]).T                      # (B, R)
    newtok = jnp.where(save, retrieve_tokens, pad_id)
    return x, save.astype(jnp.uint8), jnp.transpose(pred, (1, 0, 2)), newtok, attn_w


if __name__ == "__main__":
    # args: encoder_embed_dim=32, heads=4, ffn=64, encoder_layers=3, PAD_ID=1,
    # encoder_normalize_before=False, dropouts=0 (eval mode).
    B, S, R, C, H, F, L = 2, 8, 8, 32, 4, 64, 3
    PAD = 1
    T = S + R

    key = jax.random.PRNGKey(0)
    k_enc, k_src, k_ret, k_par = jax.random.split(key, 4)
    encoder_states = jax.random.normal(k_enc, (L, T, B, C), jnp.float32)
    src_tokens = jax.random.randint(k_src, (B, S), 2, 100, jnp.int32)
    retrieve_tokens = jax.random.randint(k_ret, (B, R), 2, 100, jnp.int32)
    retrieve_tokens = retrieve_tokens.at[:, R - 2:].set(PAD)   # exercise padding mask
    params = init_params(k_par, C, F, L)

    outs = transformer_predict_layer(encoder_states, src_tokens, retrieve_tokens,
                                     params, num_heads=H, pad_id=PAD)
    outs = jax.block_until_ready(outs)

    ref = reference(encoder_states, src_tokens, retrieve_tokens, params,
                    num_heads=H, pad_id=PAD)
    # bf16-streamed encoder states + bf16 matmul operands + approx reciprocal
    # -> slightly loosened tolerance vs the f32 reference.
    tol = dict(atol=5e-2, rtol=5e-2)
    np.testing.assert_allclose(np.asarray(outs[0]), np.asarray(ref[0]), **tol)  # x
    np.testing.assert_allclose(np.asarray(outs[2]), np.asarray(ref[2]), **tol)  # pred
    np.testing.assert_allclose(np.asarray(outs[4]), np.asarray(ref[4]), **tol)  # attn
    print("KERNEL_OK")
</pallas_src>

<mosaic_0001>
module attributes {stable_mosaic.version = 11 : i64} {
  func.func @_predict_layer_kernel(%arg0: i32, %arg1: memref<3x32x32xbf16, #tpu.memory_space<vmem>>, %arg2: memref<2x1x16xf32, #tpu.memory_space<vmem>>, %arg3: memref<4x1x32xbf16, #tpu.memory_space<vmem>>, %arg4: memref<1x3xf32, #tpu.memory_space<smem>>, %arg5: memref<32x96xbf16, #tpu.memory_space<vmem>>, %arg6: memref<1x96xf32, #tpu.memory_space<vmem>>, %arg7: memref<32x32xbf16, #tpu.memory_space<vmem>>, %arg8: memref<1x32xf32, #tpu.memory_space<vmem>>, %arg9: memref<1x32xf32, #tpu.memory_space<vmem>>, %arg10: memref<1x32xf32, #tpu.memory_space<vmem>>, %arg11: memref<32x64xbf16, #tpu.memory_space<vmem>>, %arg12: memref<1x64xf32, #tpu.memory_space<vmem>>, %arg13: memref<64x32xbf16, #tpu.memory_space<vmem>>, %arg14: memref<1x32xf32, #tpu.memory_space<vmem>>, %arg15: memref<1x32xf32, #tpu.memory_space<vmem>>, %arg16: memref<1x32xf32, #tpu.memory_space<vmem>>, %arg17: memref<32x128xbf16, #tpu.memory_space<vmem>>, %arg18: memref<1x128xf32, #tpu.memory_space<vmem>>, %arg19: memref<32x32xf32, #tpu.memory_space<vmem>>, %arg20: memref<16x128xf32, #tpu.memory_space<vmem>>, %arg21: memref<2x16x16xf32, #tpu.memory_space<vmem>>, %arg22: memref<32x32xf32, #tpu.memory_space<vmem>>) attributes {dimension_semantics = [#tpu.dimension_semantics<parallel>], iteration_bounds = array<i64: 1>, scalar_prefetch = 0 : i64, scratch_operands = 1 : i64, tpu.core_type = #tpu.core_type<tc>, window_params = [{transform_indices = @transform_0, window_bounds = array<i64: 3, 32, 32>}, {transform_indices = @transform_1, window_bounds = array<i64: 2, 1, 16>}, {pipeline_mode = #tpu.pipeline_mode<synchronous>, transform_indices = @transform_2, window_bounds = array<i64: 4, 1, 32>}, {transform_indices = @transform_3, window_bounds = array<i64: 1, 3>}, {pipeline_mode = #tpu.pipeline_mode<synchronous>, transform_indices = @transform_4, window_bounds = array<i64: 32, 96>}, {pipeline_mode = #tpu.pipeline_mode<synchronous>, transform_indices = @transform_5, window_bounds = array<i64: 1, 96>}, {pipeline_mode = #tpu.pipeline_mode<synchronous>, transform_indices = @transform_6, window_bounds = array<i64: 32, 32>}, {pipeline_mode = #tpu.pipeline_mode<synchronous>, transform_indices = @transform_7, window_bounds = array<i64: 1, 32>}, {pipeline_mode = #tpu.pipeline_mode<synchronous>, transform_indices = @transform_8, window_bounds = array<i64: 1, 32>}, {pipeline_mode = #tpu.pipeline_mode<synchronous>, transform_indices = @transform_9, window_bounds = array<i64: 1, 32>}, {pipeline_mode = #tpu.pipeline_mode<synchronous>, transform_indices = @transform_10, window_bounds = array<i64: 32, 64>}, {pipeline_mode = #tpu.pipeline_mode<synchronous>, transform_indices = @transform_11, window_bounds = array<i64: 1, 64>}, {pipeline_mode = #tpu.pipeline_mode<synchronous>, transform_indices = @transform_12, window_bounds = array<i64: 64, 32>}, {pipeline_mode = #tpu.pipeline_mode<synchronous>, transform_indices = @transform_13, window_bounds = array<i64: 1, 32>}, {pipeline_mode = #tpu.pipeline_mode<synchronous>, transform_indices = @transform_14, window_bounds = array<i64: 1, 32>}, {pipeline_mode = #tpu.pipeline_mode<synchronous>, transform_indices = @transform_15, window_bounds = array<i64: 1, 32>}, {pipeline_mode = #tpu.pipeline_mode<synchronous>, transform_indices = @transform_16, window_bounds = array<i64: 32, 128>}, {pipeline_mode = #tpu.pipeline_mode<synchronous>, transform_indices = @transform_17, window_bounds = array<i64: 1, 128>}, {transform_indices = @transform_18, window_bounds = array<i64: 32, 32>}, {transform_indices = @transform_19, window_bounds = array<i64: 16, 128>}, {transform_indices = @transform_20, window_bounds = array<i64: 2, 16, 16>}]} {
    %c0 = arith.constant 0 : index
    %c0_0 = arith.constant 0 : index
    %c0_1 = arith.constant 0 : index
    %0 = vector.load %arg1[%c0, %c0_0, %c0_1] : memref<3x32x32xbf16, #tpu.memory_space<vmem>>, vector<1x32x32xbf16>
    %1 = vector.shape_cast %0 : vector<1x32x32xbf16> to vector<32x32xbf16>
    %2 = arith.extf %1 : vector<32x32xbf16> to vector<32x32xf32>
    %c0_2 = arith.constant 0 : index
    %c0_3 = arith.constant 0 : index
    %3 = memref.load %arg4[%c0_2, %c0_3] : memref<1x3xf32, #tpu.memory_space<smem>>
    %4 = vector.broadcast %3 : f32 to vector<32x32xf32>
    %5 = arith.mulf %2, %4 : vector<32x32xf32>
    %c1 = arith.constant 1 : index
    %c0_4 = arith.constant 0 : index
    %c0_5 = arith.constant 0 : index
    %6 = vector.load %arg1[%c1, %c0_4, %c0_5] : memref<3x32x32xbf16, #tpu.memory_space<vmem>>, vector<1x32x32xbf16>
    %7 = vector.shape_cast %6 : vector<1x32x32xbf16> to vector<32x32xbf16>
    %8 = arith.extf %7 : vector<32x32xbf16> to vector<32x32xf32>
    %c0_6 = arith.constant 0 : index
    %c1_7 = arith.constant 1 : index
    %9 = memref.load %arg4[%c0_6, %c1_7] : memref<1x3xf32, #tpu.memory_space<smem>>
    %10 = vector.broadcast %9 : f32 to vector<32x32xf32>
    %11 = arith.mulf %8, %10 : vector<32x32xf32>
    %12 = arith.addf %5, %11 : vector<32x32xf32>
    %c2 = arith.constant 2 : index
    %c0_8 = arith.constant 0 : index
    %c0_9 = arith.constant 0 : index
    %13 = vector.load %arg1[%c2, %c0_8, %c0_9] : memref<3x32x32xbf16, #tpu.memory_space<vmem>>, vector<1x32x32xbf16>
    %14 = vector.shape_cast %13 : vector<1x32x32xbf16> to vector<32x32xbf16>
    %15 = arith.extf %14 : vector<32x32xbf16> to vector<32x32xf32>
    %c0_10 = arith.constant 0 : index
    %c2_11 = arith.constant 2 : index
    %16 = memref.load %arg4[%c0_10, %c2_11] : memref<1x3xf32, #tpu.memory_space<smem>>
    %17 = vector.broadcast %16 : f32 to vector<32x32xf32>
    %18 = arith.mulf %15, %17 : vector<32x32xf32>
    %19 = arith.addf %12, %18 : vector<32x32xf32>
    %20 = arith.truncf %19 : vector<32x32xf32> to vector<32x32xbf16>
    %c0_12 = arith.constant 0 : index
    %c0_13 = arith.constant 0 : index
    %21 = vector.load %arg5[%c0_12, %c0_13] : memref<32x96xbf16, #tpu.memory_space<vmem>>, vector<32x96xbf16>
    %cst = arith.constant dense<0.000000e+00> : vector<32x96xf32>
    %22 = tpu.matmul %20, %21, %cst {dimension_numbers = #tpu.dot_dimension_numbers<[1], [0], [0], [1], [0, 0, 1, 1], [], []>} : vector<32x32xbf16>, vector<32x96xbf16>, vector<32x96xf32> -> vector<32x96xf32>
    %c0_14 = arith.constant 0 : index
    %c0_15 = arith.constant 0 : index
    %23 = vector.load %arg6[%c0_14, %c0_15] : memref<1x96xf32, #tpu.memory_space<vmem>>, vector<1x96xf32>
    %24 = vector.broadcast %23 : vector<1x96xf32> to vector<32x96xf32>
    %25 = arith.addf %22, %24 : vector<32x96xf32>
    %26 = vector.extract_strided_slice %25 {offsets = [0, 0], sizes = [32, 32], strides = [1, 1]} : vector<32x96xf32> to vector<32x32xf32>
    %27 = vector.extract_strided_slice %25 {offsets = [0, 32], sizes = [32, 32], strides = [1, 1]} : vector<32x96xf32> to vector<32x32xf32>
    %28 = vector.extract_strided_slice %25 {offsets = [0, 64], sizes = [32, 32], strides = [1, 1]} : vector<32x96xf32> to vector<32x32xf32>
    %c0_16 = arith.constant 0 : index
    %c0_17 = arith.constant 0 : index
    %c0_18 = arith.constant 0 : index
    %29 = vector.load %arg3[%c0_16, %c0_17, %c0_18] : memref<4x1x32xbf16, #tpu.memory_space<vmem>>, vector<4x1x32xbf16>
    %30 = vector.extract_strided_slice %26 {offsets = [0, 0], sizes = [16, 32], strides = [1, 1]} : vector<32x32xf32> to vector<16x32xf32>
    %31 = vector.extract_strided_slice %27 {offsets = [0, 0], sizes = [16, 32], strides = [1, 1]} : vector<32x32xf32> to vector<16x32xf32>
    %32 = vector.extract_strided_slice %28 {offsets = [0, 0], sizes = [16, 32], strides = [1, 1]} : vector<32x32xf32> to vector<16x32xf32>
    %33 = arith.truncf %30 : vector<16x32xf32> to vector<16x32xbf16>
    %34 = vector.shape_cast %33 : vector<16x32xbf16> to vector<1x16x32xbf16>
    %35 = vector.broadcast %34 : vector<1x16x32xbf16> to vector<4x16x32xbf16>
    %36 = vector.broadcast %29 : vector<4x1x32xbf16> to vector<4x16x32xbf16>
    %37 = arith.mulf %35, %36 : vector<4x16x32xbf16>
    %38 = vector.shape_cast %37 : vector<4x16x32xbf16> to vector<64x32xbf16>
    %39 = arith.truncf %31 : vector<16x32xf32> to vector<16x32xbf16>
    %cst_19 = arith.constant dense<0.000000e+00> : vector<64x16xf32>
    %40 = tpu.matmul %38, %39, %cst_19 {dimension_numbers = #tpu.dot_dimension_numbers<[1], [1], [0], [0], [0, 0, 1, 0], [], []>} : vector<64x32xbf16>, vector<16x32xbf16>, vector<64x16xf32> -> vector<64x16xf32>
    %c0_20 = arith.constant 0 : index
    %c0_21 = arith.constant 0 : index
    %c0_22 = arith.constant 0 : index
    %41 = vector.load %arg2[%c0_20, %c0_21, %c0_22] : memref<2x1x16xf32, #tpu.memory_space<vmem>>, vector<1x1x16xf32>
    %42 = vector.shape_cast %41 : vector<1x1x16xf32> to vector<1x16xf32>
    %43 = vector.broadcast %42 : vector<1x16xf32> to vector<64x16xf32>
    %44 = arith.addf %40, %43 : vector<64x16xf32>
    %cst_23 = arith.constant dense<0xFF800000> : vector<64xf32>
    %45 = vector.multi_reduction <maximumf>, %44, %cst_23 [1] : vector<64x16xf32> to vector<64xf32>
    %46 = vector.shape_cast %45 : vector<64xf32> to vector<64x1xf32>
    %47 = vector.broadcast %46 : vector<64x1xf32> to vector<64x16xf32>
    %48 = arith.subf %44, %47 : vector<64x16xf32>
    %49 = math.exp %48 : vector<64x16xf32>
    %cst_24 = arith.constant dense<0.000000e+00> : vector<64xf32>
    %50 = vector.multi_reduction <add>, %49, %cst_24 [1] : vector<64x16xf32> to vector<64xf32>
    %51 = vector.shape_cast %50 : vector<64xf32> to vector<64x1xf32>
    %52 = tpu.reciprocal %51 {approx = true} : vector<64x1xf32> -> vector<64x1xf32>
    %53 = vector.broadcast %52 : vector<64x1xf32> to vector<64x16xf32>
    %54 = arith.mulf %49, %53 : vector<64x16xf32>
    %55 = vector.shape_cast %54 : vector<64x16xf32> to vector<4x16x16xf32>
    %cst_25 = arith.constant dense<0.000000e+00> : vector<16x16xf32>
    %56 = vector.multi_reduction <add>, %55, %cst_25 [0] : vector<4x16x16xf32> to vector<16x16xf32>
    %cst_26 = arith.constant 2.500000e-01 : f32
    %57 = vector.broadcast %cst_26 : f32 to vector<16x16xf32>
    %58 = arith.mulf %56, %57 : vector<16x16xf32>
    %c0_27 = arith.constant 0 : index
    %c0_28 = arith.constant 0 : index
    %c0_29 = arith.constant 0 : index
    %59 = vector.load %arg21[%c0_27, %c0_28, %c0_29] : memref<2x16x16xf32, #tpu.memory_space<vmem>>, vector<1x16x16xf32>
    %60 = vector.shape_cast %59 : vector<1x16x16xf32> to vector<16x16xf32>
    %61 = vector.shape_cast %58 : vector<16x16xf32> to vector<1x16x16xf32>
    tpu.vector_store %arg21[%c0_27, %c0_28, %c0_29], %61 {strides = array<i32>} : memref<2x16x16xf32, #tpu.memory_space<vmem>>, vector<1x16x16xf32>,
    %62 = arith.truncf %54 : vector<64x16xf32> to vector<64x16xbf16>
    %63 = arith.truncf %32 : vector<16x32xf32> to vector<16x32xbf16>
    %cst_30 = arith.constant dense<0.000000e+00> : vector<64x32xf32>
    %64 = tpu.matmul %62, %63, %cst_30 {dimension_numbers = #tpu.dot_dimension_numbers<[1], [0], [0], [1], [0, 0, 1, 1], [], []>} : vector<64x16xbf16>, vector<16x32xbf16>, vector<64x32xf32> -> vector<64x32xf32>
    %65 = vector.shape_cast %64 : vector<64x32xf32> to vector<4x16x32xf32>
    %66 = arith.extf %29 : vector<4x1x32xbf16> to vector<4x1x32xf32>
    %67 = vector.broadcast %66 : vector<4x1x32xf32> to vector<4x16x32xf32>
    %68 = arith.mulf %65, %67 : vector<4x16x32xf32>
    %cst_31 = arith.constant dense<0.000000e+00> : vector<16x32xf32>
    %69 = vector.multi_reduction <add>, %68, %cst_31 [0] : vector<4x16x32xf32> to vector<16x32xf32>
    %c0_32 = arith.constant 0 : index
    %c0_33 = arith.constant 0 : index
    %70 = vector.load %arg22[%c0_32, %c0_33] : memref<32x32xf32, #tpu.memory_space<vmem>>, vector<16x32xf32>
    tpu.vector_store %arg22[%c0_32, %c0_33], %69 {strides = array<i32>} : memref<32x32xf32, #tpu.memory_space<vmem>>, vector<16x32xf32>,
    %71 = vector.extract_strided_slice %26 {offsets = [16, 0], sizes = [16, 32], strides = [1, 1]} : vector<32x32xf32> to vector<16x32xf32>
    %72 = vector.extract_strided_slice %27 {offsets = [16, 0], sizes = [16, 32], strides = [1, 1]} : vector<32x32xf32> to vector<16x32xf32>
    %73 = vector.extract_strided_slice %28 {offsets = [16, 0], sizes = [16, 32], strides = [1, 1]} : vector<32x32xf32> to vector<16x32xf32>
    %74 = arith.truncf %71 : vector<16x32xf32> to vector<16x32xbf16>
    %75 = vector.shape_cast %74 : vector<16x32xbf16> to vector<1x16x32xbf16>
    %76 = vector.broadcast %75 : vector<1x16x32xbf16> to vector<4x16x32xbf16>
    %77 = vector.broadcast %29 : vector<4x1x32xbf16> to vector<4x16x32xbf16>
    %78 = arith.mulf %76, %77 : vector<4x16x32xbf16>
    %79 = vector.shape_cast %78 : vector<4x16x32xbf16> to vector<64x32xbf16>
    %80 = arith.truncf %72 : vector<16x32xf32> to vector<16x32xbf16>
    %cst_34 = arith.constant dense<0.000000e+00> : vector<64x16xf32>
    %81 = tpu.matmul %79, %80, %cst_34 {dimension_numbers = #tpu.dot_dimension_numbers<[1], [1], [0], [0], [0, 0, 1, 0], [], []>} : vector<64x32xbf16>, vector<16x32xbf16>, vector<64x16xf32> -> vector<64x16xf32>
    %c1_35 = arith.constant 1 : index
    %c0_36 = arith.constant 0 : index
    %c0_37 = arith.constant 0 : index
    %82 = vector.load %arg2[%c1_35, %c0_36, %c0_37] : memref<2x1x16xf32, #tpu.memory_space<vmem>>, vector<1x1x16xf32>
    %83 = vector.shape_cast %82 : vector<1x1x16xf32> to vector<1x16xf32>
    %84 = vector.broadcast %83 : vector<1x16xf32> to vector<64x16xf32>
    %85 = arith.addf %81, %84 : vector<64x16xf32>
    %cst_38 = arith.constant dense<0xFF800000> : vector<64xf32>
    %86 = vector.multi_reduction <maximumf>, %85, %cst_38 [1] : vector<64x16xf32> to vector<64xf32>
    %87 = vector.shape_cast %86 : vector<64xf32> to vector<64x1xf32>
    %88 = vector.broadcast %87 : vector<64x1xf32> to vector<64x16xf32>
    %89 = arith.subf %85, %88 : vector<64x16xf32>
    %90 = math.exp %89 : vector<64x16xf32>
    %cst_39 = arith.constant dense<0.000000e+00> : vector<64xf32>
    %91 = vector.multi_reduction <add>, %90, %cst_39 [1] : vector<64x16xf32> to vector<64xf32>
    %92 = vector.shape_cast %91 : vector<64xf32> to vector<64x1xf32>
    %93 = tpu.reciprocal %92 {approx = true} : vector<64x1xf32> -> vector<64x1xf32>
    %94 = vector.broadcast %93 : vector<64x1xf32> to vector<64x16xf32>
    %95 = arith.mulf %90, %94 : vector<64x16xf32>
    %96 = vector.shape_cast %95 : vector<64x16xf32> to vector<4x16x16xf32>
    %cst_40 = arith.constant dense<0.000000e+00> : vector<16x16xf32>
    %97 = vector.multi_reduction <add>, %96, %cst_40 [0] : vector<4x16x16xf32> to vector<16x16xf32>
    %cst_41 = arith.constant 2.500000e-01 : f32
    %98 = vector.broadcast %cst_41 : f32 to vector<16x16xf32>
    %99 = arith.mulf %97, %98 : vector<16x16xf32>
    %c1_42 = arith.constant 1 : index
    %c0_43 = arith.constant 0 : index
    %c0_44 = arith.constant 0 : index
    %100 = vector.load %arg21[%c1_42, %c0_43, %c0_44] : memref<2x16x16xf32, #tpu.memory_space<vmem>>, vector<1x16x16xf32>
    %101 = vector.shape_cast %100 : vector<1x16x16xf32> to vector<16x16xf32>
    %102 = vector.shape_cast %99 : vector<16x16xf32> to vector<1x16x16xf32>
    tpu.vector_store %arg21[%c1_42, %c0_43, %c0_44], %102 {strides = array<i32>} : memref<2x16x16xf32, #tpu.memory_space<vmem>>, vector<1x16x16xf32>,
    %103 = arith.truncf %95 : vector<64x16xf32> to vector<64x16xbf16>
    %104 = arith.truncf %73 : vector<16x32xf32> to vector<16x32xbf16>
    %cst_45 = arith.constant dense<0.000000e+00> : vector<64x32xf32>
    %105 = tpu.matmul %103, %104, %cst_45 {dimension_numbers = #tpu.dot_dimension_numbers<[1], [0], [0], [1], [0, 0, 1, 1], [], []>} : vector<64x16xbf16>, vector<16x32xbf16>, vector<64x32xf32> -> vector<64x32xf32>
    %106 = vector.shape_cast %105 : vector<64x32xf32> to vector<4x16x32xf32>
    %107 = arith.extf %29 : vector<4x1x32xbf16> to vector<4x1x32xf32>
    %108 = vector.broadcast %107 : vector<4x1x32xf32> to vector<4x16x32xf32>
    %109 = arith.mulf %106, %108 : vector<4x16x32xf32>
    %cst_46 = arith.constant dense<0.000000e+00> : vector<16x32xf32>
    %110 = vector.multi_reduction <add>, %109, %cst_46 [0] : vector<4x16x32xf32> to vector<16x32xf32>
    %c16 = arith.constant 16 : index
    %c0_47 = arith.constant 0 : index
    %111 = vector.load %arg22[%c16, %c0_47] : memref<32x32xf32, #tpu.memory_space<vmem>>, vector<16x32xf32>
    tpu.vector_store %arg22[%c16, %c0_47], %110 {strides = array<i32>} : memref<32x32xf32, #tpu.memory_space<vmem>>, vector<16x32xf32>,
    %c0_48 = arith.constant 0 : index
    %c0_49 = arith.constant 0 : index
    %112 = vector.load %arg22[%c0_48, %c0_49] : memref<32x32xf32, #tpu.memory_space<vmem>>, vector<32x32xf32>
    %113 = arith.truncf %112 : vector<32x32xf32> to vector<32x32xbf16>
    %c0_50 = arith.constant 0 : index
    %c0_51 = arith.constant 0 : index
    %114 = vector.load %arg7[%c0_50, %c0_51] : memref<32x32xbf16, #tpu.memory_space<vmem>>, vector<32x32xbf16>
    %cst_52 = arith.constant dense<0.000000e+00> : vector<32x32xf32>
    %115 = tpu.matmul %113, %114, %cst_52 {dimension_numbers = #tpu.dot_dimension_numbers<[1], [0], [0], [1], [0, 0, 1, 1], [], []>} : vector<32x32xbf16>, vector<32x32xbf16>, vector<32x32xf32> -> vector<32x32xf32>
    %c0_53 = arith.constant 0 : index
    %c0_54 = arith.constant 0 : index
    %116 = vector.load %arg8[%c0_53, %c0_54] : memref<1x32xf32, #tpu.memory_space<vmem>>, vector<1x32xf32>
    %117 = vector.broadcast %116 : vector<1x32xf32> to vector<32x32xf32>
    %118 = arith.addf %115, %117 : vector<32x32xf32>
    %119 = arith.addf %19, %118 : vector<32x32xf32>
    %c0_55 = arith.constant 0 : index
    %c0_56 = arith.constant 0 : index
    %120 = vector.load %arg9[%c0_55, %c0_56] : memref<1x32xf32, #tpu.memory_space<vmem>>, vector<1x32xf32>
    %c0_57 = arith.constant 0 : index
    %c0_58 = arith.constant 0 : index
    %121 = vector.load %arg10[%c0_57, %c0_58] : memref<1x32xf32, #tpu.memory_space<vmem>>, vector<1x32xf32>
    %cst_59 = arith.constant dense<0.000000e+00> : vector<32xf32>
    %122 = vector.multi_reduction <add>, %119, %cst_59 [1] : vector<32x32xf32> to vector<32xf32>
    %123 = vector.shape_cast %122 : vector<32xf32> to vector<32x1xf32>
    %cst_60 = arith.constant 3.200000e+01 : f32
    %124 = vector.broadcast %cst_60 : f32 to vector<32x1xf32>
    %125 = arith.divf %123, %124 : vector<32x1xf32>
    %126 = vector.broadcast %125 : vector<32x1xf32> to vector<32x32xf32>
    %127 = arith.subf %119, %126 : vector<32x32xf32>
    %128 = arith.mulf %127, %127 : vector<32x32xf32>
    %cst_61 = arith.constant dense<0.000000e+00> : vector<32xf32>
    %129 = vector.multi_reduction <add>, %128, %cst_61 [1] : vector<32x32xf32> to vector<32xf32>
    %130 = vector.shape_cast %129 : vector<32xf32> to vector<32x1xf32>
    %cst_62 = arith.constant 3.200000e+01 : f32
    %131 = vector.broadcast %cst_62 : f32 to vector<32x1xf32>
    %132 = arith.divf %130, %131 : vector<32x1xf32>
    %cst_63 = arith.constant 9.99999974E-6 : f32
    %133 = vector.broadcast %cst_63 : f32 to vector<32x1xf32>
    %134 = arith.addf %132, %133 : vector<32x1xf32>
    %135 = math.rsqrt %134 : vector<32x1xf32>
    %136 = vector.broadcast %135 : vector<32x1xf32> to vector<32x32xf32>
    %137 = arith.mulf %127, %136 : vector<32x32xf32>
    %138 = vector.broadcast %120 : vector<1x32xf32> to vector<32x32xf32>
    %139 = arith.mulf %137, %138 : vector<32x32xf32>
    %140 = vector.broadcast %121 : vector<1x32xf32> to vector<32x32xf32>
    %141 = arith.addf %139, %140 : vector<32x32xf32>
    %142 = arith.truncf %141 : vector<32x32xf32> to vector<32x32xbf16>
    %c0_64 = arith.constant 0 : index
    %c0_65 = arith.constant 0 : index
    %143 = vector.load %arg11[%c0_64, %c0_65] : memref<32x64xbf16, #tpu.memory_space<vmem>>, vector<32x64xbf16>
    %cst_66 = arith.constant dense<0.000000e+00> : vector<32x64xf32>
    %144 = tpu.matmul %142, %143, %cst_66 {dimension_numbers = #tpu.dot_dimension_numbers<[1], [0], [0], [1], [0, 0, 1, 1], [], []>} : vector<32x32xbf16>, vector<32x64xbf16>, vector<32x64xf32> -> vector<32x64xf32>
    %c0_67 = arith.constant 0 : index
    %c0_68 = arith.constant 0 : index
    %145 = vector.load %arg12[%c0_67, %c0_68] : memref<1x64xf32, #tpu.memory_space<vmem>>, vector<1x64xf32>
    %146 = vector.broadcast %145 : vector<1x64xf32> to vector<32x64xf32>
    %147 = arith.addf %144, %146 : vector<32x64xf32>
    %cst_69 = arith.constant 0.000000e+00 : f32
    %148 = vector.broadcast %cst_69 : f32 to vector<32x64xf32>
    %149 = arith.maximumf %147, %148 : vector<32x64xf32>
    %150 = arith.truncf %149 : vector<32x64xf32> to vector<32x64xbf16>
    %c0_70 = arith.constant 0 : index
    %c0_71 = arith.constant 0 : index
    %151 = vector.load %arg13[%c0_70, %c0_71] : memref<64x32xbf16, #tpu.memory_space<vmem>>, vector<64x32xbf16>
    %cst_72 = arith.constant dense<0.000000e+00> : vector<32x32xf32>
    %152 = tpu.matmul %150, %151, %cst_72 {dimension_numbers = #tpu.dot_dimension_numbers<[1], [0], [0], [1], [0, 0, 1, 1], [], []>} : vector<32x64xbf16>, vector<64x32xbf16>, vector<32x32xf32> -> vector<32x32xf32>
    %c0_73 = arith.constant 0 : index
    %c0_74 = arith.constant 0 : index
    %153 = vector.load %arg14[%c0_73, %c0_74] : memref<1x32xf32, #tpu.memory_space<vmem>>, vector<1x32xf32>
    %154 = vector.broadcast %153 : vector<1x32xf32> to vector<32x32xf32>
    %155 = arith.addf %152, %154 : vector<32x32xf32>
    %156 = arith.addf %141, %155 : vector<32x32xf32>
    %c0_75 = arith.constant 0 : index
    %c0_76 = arith.constant 0 : index
    %157 = vector.load %arg15[%c0_75, %c0_76] : memref<1x32xf32, #tpu.memory_space<vmem>>, vector<1x32xf32>
    %c0_77 = arith.constant 0 : index
    %c0_78 = arith.constant 0 : index
    %158 = vector.load %arg16[%c0_77, %c0_78] : memref<1x32xf32, #tpu.memory_space<vmem>>, vector<1x32xf32>
    %cst_79 = arith.constant dense<0.000000e+00> : vector<32xf32>
    %159 = vector.multi_reduction <add>, %156, %cst_79 [1] : vector<32x32xf32> to vector<32xf32>
    %160 = vector.shape_cast %159 : vector<32xf32> to vector<32x1xf32>
    %cst_80 = arith.constant 3.200000e+01 : f32
    %161 = vector.broadcast %cst_80 : f32 to vector<32x1xf32>
    %162 = arith.divf %160, %161 : vector<32x1xf32>
    %163 = vector.broadcast %162 : vector<32x1xf32> to vector<32x32xf32>
    %164 = arith.subf %156, %163 : vector<32x32xf32>
    %165 = arith.mulf %164, %164 : vector<32x32xf32>
    %cst_81 = arith.constant dense<0.000000e+00> : vector<32xf32>
    %166 = vector.multi_reduction <add>, %165, %cst_81 [1] : vector<32x32xf32> to vector<32xf32>
    %167 = vector.shape_cast %166 : vector<32xf32> to vector<32x1xf32>
    %cst_82 = arith.constant 3.200000e+01 : f32
    %168 = vector.broadcast %cst_82 : f32 to vector<32x1xf32>
    %169 = arith.divf %167, %168 : vector<32x1xf32>
    %cst_83 = arith.constant 9.99999974E-6 : f32
    %170 = vector.broadcast %cst_83 : f32 to vector<32x1xf32>
    %171 = arith.addf %169, %170 : vector<32x1xf32>
    %172 = math.rsqrt %171 : vector<32x1xf32>
    %173 = vector.broadcast %172 : vector<32x1xf32> to vector<32x32xf32>
    %174 = arith.mulf %164, %173 : vector<32x32xf32>
    %175 = vector.broadcast %157 : vector<1x32xf32> to vector<32x32xf32>
    %176 = arith.mulf %174, %175 : vector<32x32xf32>
    %177 = vector.broadcast %158 : vector<1x32xf32> to vector<32x32xf32>
    %178 = arith.addf %176, %177 : vector<32x32xf32>
    %c0_84 = arith.constant 0 : index
    %c0_85 = arith.constant 0 : index
    %179 = vector.load %arg19[%c0_84, %c0_85] : memref<32x32xf32, #tpu.memory_space<vmem>>, vector<32x32xf32>
    tpu.vector_store %arg19[%c0_84, %c0_85], %178 {strides = array<i32>} : memref<32x32xf32, #tpu.memory_space<vmem>>, vector<32x32xf32>,
    %180 = arith.truncf %178 : vector<32x32xf32> to vector<32x32xbf16>
    %c0_86 = arith.constant 0 : index
    %c0_87 = arith.constant 0 : index
    %181 = vector.load %arg17[%c0_86, %c0_87] : memref<32x128xbf16, #tpu.memory_space<vmem>>, vector<32x128xbf16>
    %cst_88 = arith.constant dense<0.000000e+00> : vector<32x128xf32>
    %182 = tpu.matmul %180, %181, %cst_88 {dimension_numbers = #tpu.dot_dimension_numbers<[1], [0], [0], [1], [0, 0, 1, 1], [], []>} : vector<32x32xbf16>, vector<32x128xbf16>, vector<32x128xf32> -> vector<32x128xf32>
    %c0_89 = arith.constant 0 : index
    %c0_90 = arith.constant 0 : index
    %183 = vector.load %arg18[%c0_89, %c0_90] : memref<1x128xf32, #tpu.memory_space<vmem>>, vector<1x128xf32>
    %184 = vector.broadcast %183 : vector<1x128xf32> to vector<32x128xf32>
    %185 = arith.addf %182, %184 : vector<32x128xf32>
    %186 = vector.extract_strided_slice %185 {offsets = [8, 0], sizes = [8, 128], strides = [1, 1]} : vector<32x128xf32> to vector<8x128xf32>
    %c0_91 = arith.constant 0 : index
    %c0_92 = arith.constant 0 : index
    %187 = vector.load %arg20[%c0_91, %c0_92] : memref<16x128xf32, #tpu.memory_space<vmem>>, vector<8x128xf32>
    tpu.vector_store %arg20[%c0_91, %c0_92], %186 {strides = array<i32>} : memref<16x128xf32, #tpu.memory_space<vmem>>, vector<8x128xf32>,
    %188 = vector.extract_strided_slice %185 {offsets = [24, 0], sizes = [8, 128], strides = [1, 1]} : vector<32x128xf32> to vector<8x128xf32>
    %c8 = arith.constant 8 : index
    %c0_93 = arith.constant 0 : index
    %189 = vector.load %arg20[%c8, %c0_93] : memref<16x128xf32, #tpu.memory_space<vmem>>, vector<8x128xf32>
    tpu.vector_store %arg20[%c8, %c0_93], %188 {strides = array<i32>} : memref<16x128xf32, #tpu.memory_space<vmem>>, vector<8x128xf32>,
    return
  }
  func.func @transform_0(%arg0: i32) -> (i32, i32, i32) {
    %c0_i32 = arith.constant 0 : i32
    %c0_i32_0 = arith.constant 0 : i32
    %c0_i32_1 = arith.constant 0 : i32
    return %c0_i32, %arg0, %c0_i32_0 : i32, i32, i32
  }
  func.func @transform_1(%arg0: i32) -> (i32, i32, i32) {
    %c0_i32 = arith.constant 0 : i32
    %c0_i32_0 = arith.constant 0 : i32
    %c0_i32_1 = arith.constant 0 : i32
    return %arg0, %c0_i32, %c0_i32_0 : i32, i32, i32
  }
  func.func @transform_2(%arg0: i32) -> (i32, i32, i32) {
    %c0_i32 = arith.constant 0 : i32
    %c0_i32_0 = arith.constant 0 : i32
    %c0_i32_1 = arith.constant 0 : i32
    %c0_i32_2 = arith.constant 0 : i32
    return %c0_i32, %c0_i32_0, %c0_i32_1 : i32, i32, i32
  }
  func.func @transform_3(%arg0: i32) -> (i32, i32) {
    %c0_i32 = arith.constant 0 : i32
    %c0_i32_0 = arith.constant 0 : i32
    %c0_i32_1 = arith.constant 0 : i32
    return %c0_i32, %c0_i32_0 : i32, i32
  }
  func.func @transform_4(%arg0: i32) -> (i32, i32) {
    %c0_i32 = arith.constant 0 : i32
    %c0_i32_0 = arith.constant 0 : i32
    %c0_i32_1 = arith.constant 0 : i32
    return %c0_i32, %c0_i32_0 : i32, i32
  }
  func.func @transform_5(%arg0: i32) -> (i32, i32) {
    %c0_i32 = arith.constant 0 : i32
    %c0_i32_0 = arith.constant 0 : i32
    %c0_i32_1 = arith.constant 0 : i32
    return %c0_i32, %c0_i32_0 : i32, i32
  }
  func.func @transform_6(%arg0: i32) -> (i32, i32) {
    %c0_i32 = arith.constant 0 : i32
    %c0_i32_0 = arith.constant 0 : i32
    %c0_i32_1 = arith.constant 0 : i32
    return %c0_i32, %c0_i32_0 : i32, i32
  }
  func.func @transform_7(%arg0: i32) -> (i32, i32) {
    %c0_i32 = arith.constant 0 : i32
    %c0_i32_0 = arith.constant 0 : i32
    %c0_i32_1 = arith.constant 0 : i32
    return %c0_i32, %c0_i32_0 : i32, i32
  }
  func.func @transform_8(%arg0: i32) -> (i32, i32) {
    %c0_i32 = arith.constant 0 : i32
    %c0_i32_0 = arith.constant 0 : i32
    %c0_i32_1 = arith.constant 0 : i32
    return %c0_i32, %c0_i32_0 : i32, i32
  }
  func.func @transform_9(%arg0: i32) -> (i32, i32) {
    %c0_i32 = arith.constant 0 : i32
    %c0_i32_0 = arith.constant 0 : i32
    %c0_i32_1 = arith.constant 0 : i32
    return %c0_i32, %c0_i32_0 : i32, i32
  }
  func.func @transform_10(%arg0: i32) -> (i32, i32) {
    %c0_i32 = arith.constant 0 : i32
    %c0_i32_0 = arith.constant 0 : i32
    %c0_i32_1 = arith.constant 0 : i32
    return %c0_i32, %c0_i32_0 : i32, i32
  }
  func.func @transform_11(%arg0: i32) -> (i32, i32) {
    %c0_i32 = arith.constant 0 : i32
    %c0_i32_0 = arith.constant 0 : i32
    %c0_i32_1 = arith.constant 0 : i32
    return %c0_i32, %c0_i32_0 : i32, i32
  }
  func.func @transform_12(%arg0: i32) -> (i32, i32) {
    %c0_i32 = arith.constant 0 : i32
    %c0_i32_0 = arith.constant 0 : i32
    %c0_i32_1 = arith.constant 0 : i32
    return %c0_i32, %c0_i32_0 : i32, i32
  }
  func.func @transform_13(%arg0: i32) -> (i32, i32) {
    %c0_i32 = arith.constant 0 : i32
    %c0_i32_0 = arith.constant 0 : i32
    %c0_i32_1 = arith.constant 0 : i32
    return %c0_i32, %c0_i32_0 : i32, i32
  }
  func.func @transform_14(%arg0: i32) -> (i32, i32) {
    %c0_i32 = arith.constant 0 : i32
    %c0_i32_0 = arith.constant 0 : i32
    %c0_i32_1 = arith.constant 0 : i32
    return %c0_i32, %c0_i32_0 : i32, i32
  }
  func.func @transform_15(%arg0: i32) -> (i32, i32) {
    %c0_i32 = arith.constant 0 : i32
    %c0_i32_0 = arith.constant 0 : i32
    %c0_i32_1 = arith.constant 0 : i32
    return %c0_i32, %c0_i32_0 : i32, i32
  }
  func.func @transform_16(%arg0: i32) -> (i32, i32) {
    %c0_i32 = arith.constant 0 : i32
    %c0_i32_0 = arith.constant 0 : i32
    %c0_i32_1 = arith.constant 0 : i32
    return %c0_i32, %c0_i32_0 : i32, i32
  }
  func.func @transform_17(%arg0: i32) -> (i32, i32) {
    %c0_i32 = arith.constant 0 : i32
    %c0_i32_0 = arith.constant 0 : i32
    %c0_i32_1 = arith.constant 0 : i32
    return %c0_i32, %c0_i32_0 : i32, i32
  }
  func.func @transform_18(%arg0: i32) -> (i32, i32) {
    %c0_i32 = arith.constant 0 : i32
    %c0_i32_0 = arith.constant 0 : i32
    return %arg0, %c0_i32 : i32, i32
  }
  func.func @transform_19(%arg0: i32) -> (i32, i32) {
    %c0_i32 = arith.constant 0 : i32
    %c0_i32_0 = arith.constant 0 : i32
    return %arg0, %c0_i32 : i32, i32
  }
  func.func @transform_20(%arg0: i32) -> (i32, i32, i32) {
    %c0_i32 = arith.constant 0 : i32
    %c0_i32_0 = arith.constant 0 : i32
    %c0_i32_1 = arith.constant 0 : i32
    return %arg0, %c0_i32, %c0_i32_0 : i32, i32, i32
  }
}

</mosaic_0001>

<llo_original>
// kernel: tpu_custom_call.1
$region0: #{tpu_custom_call.1}
  #allocation0 [shape = 'u32[]', space=smem, size = 0x4, offset = 0x4, fixed_abs, tag = 'smem constant byte address 0x4 - core index']
  #allocation1 [shape = 'u32[144,128]{1,0:T(1,128)}', space=vmem, size = 0x12000, scoped, tag = 'internal scratch']
  #allocation2 [shape = 'f32[32,32]{1,0:T(8,128)}', space=vmem, size = 0x4000, scoped, tag = 'scratch operand']
  %s0 = inlined_call_operand.vmem [shape: bf16[3,32,32], index: 0, kind: input, shape index: {}]
  %s1 = inlined_call_operand.hbm [shape: f32[2,1,16], index: 1, kind: input, shape index: {}]
  %s2 = inlined_call_operand.vmem [shape: bf16[4,1,32], index: 2, kind: input, shape index: {}]
  %s3 = inlined_call_operand.hbm [shape: f32[1,3], index: 3, kind: input, shape index: {}]
  %s4 = inlined_call_operand.vmem [shape: bf16[32,96], index: 4, kind: input, shape index: {}]
  %s5 = inlined_call_operand.hbm [shape: f32[1,96], index: 5, kind: input, shape index: {}]
  %s6 = inlined_call_operand.hbm [shape: bf16[32,32], index: 6, kind: input, shape index: {}]
  %s7 = inlined_call_operand.hbm [shape: f32[1,32], index: 7, kind: input, shape index: {}]
  %s8 = inlined_call_operand.vmem [shape: f32[1,32], index: 8, kind: input, shape index: {}]
  %s9 = inlined_call_operand.vmem [shape: f32[1,32], index: 9, kind: input, shape index: {}]
  %s10 = inlined_call_operand.hbm [shape: bf16[32,64], index: 10, kind: input, shape index: {}]
  %s11 = inlined_call_operand.vmem [shape: f32[1,64], index: 11, kind: input, shape index: {}]
  %s12 = inlined_call_operand.vmem [shape: bf16[64,32], index: 12, kind: input, shape index: {}]
  %s13 = inlined_call_operand.vmem [shape: f32[1,32], index: 13, kind: input, shape index: {}]
  %s14 = inlined_call_operand.vmem [shape: f32[1,32], index: 14, kind: input, shape index: {}]
  %s15 = inlined_call_operand.vmem [shape: f32[1,32], index: 15, kind: input, shape index: {}]
  %s16 = inlined_call_operand.vmem [shape: bf16[32,128], index: 16, kind: input, shape index: {}]
  %s17 = inlined_call_operand.vmem [shape: f32[1,128], index: 17, kind: input, shape index: {}]
  %s18 = inlined_call_operand.hbm [shape: f32[32,32], index: 18, kind: output, shape index: {0}]
  %s19 = inlined_call_operand.hbm [shape: f32[16,128], index: 19, kind: output, shape index: {1}]
  %s20 = inlined_call_operand.hbm [shape: f32[2,16,16], index: 20, kind: output, shape index: {2}]
  %21 = xla_tuple %s18, %s19, %s20
  %s22 = sld [smem:[#allocation0]]
  $region122: #{tpu_custom_call.1} parent=0
    _
  %s24 = ssub.s32 1, %s22
  %s25 = scalar_select 0, %s24, %s22
  $region1: #{tpu_custom_call.1} parent=0
    #allocation3 [shape = 'u8[1024]{0}', space=vmem, size = 0x400, scoped, tag = 'input window, operand 1, single buffered']
    #allocation4 [shape = 's32[1]{0}', space=sflag, size = 0x4, scoped, tag = 'scoped memory for tpu_custom_call.1']
    #allocation5 [shape = 's32[1]{0}', space=sflag, size = 0x4, scoped, tag = 'scoped memory for tpu_custom_call.1']
    #allocation6 [shape = 's32[1]{0}', space=sflag, size = 0x4, scoped, tag = 'scoped memory for tpu_custom_call.1']
    #allocation7 [shape = 'u8[512]{0}', space=smem, size = 0x200, scoped, tag = 'input window, operand 3, single buffered']
    #allocation8 [shape = 'u8[512]{0}', space=vmem, size = 0x400, scoped, tag = 'input window, operand 5, single buffered']
    #allocation9 [shape = 's32[1]{0}', space=sflag, size = 0x4, scoped, tag = 'scoped memory for tpu_custom_call.1']
    #allocation10 [shape = 'u8[8192]{0}', space=vmem, size = 0x2000, scoped, tag = 'input window, operand 6, single buffered']
    #allocation11 [shape = 'u8[512]{0}', space=vmem, size = 0x400, scoped, tag = 'input window, operand 7, single buffered']
    #allocation12 [shape = 's32[1]{0}', space=sflag, size = 0x4, scoped, tag = 'scoped memory for tpu_custom_call.1']
    #allocation13 [shape = 'u8[8192]{0}', space=vmem, size = 0x2000, scoped, tag = 'input window, operand 10, single buffered']
    #allocation14 [shape = 'u8[16384]{0}', space=vmem, size = 0x4000, scoped, tag = 'output window, operand 0, single buffered']
    #allocation15 [shape = 'u8[8192]{0}', space=vmem, size = 0x2000, scoped, tag = 'output window, operand 1, single buffered']
    #allocation16 [shape = 's32[1]{0}', space=sflag, size = 0x4, scoped, tag = 'scoped memory for tpu_custom_call.1']
    #allocation17 [shape = 'u8[16384]{0}', space=vmem, size = 0x4000, scoped, tag = 'output window, operand 2, single buffered']
    %26 = vsyncpa [#allocation4], 0
    %27 = vsyncpa [#allocation6], 0
    %28 = vsyncpa [#allocation9], 0
    %29 = vsyncpa [#allocation12], 0
    %30 = vsyncpa [#allocation5], 0
    %31 = vsyncpa [#allocation16], 0
    // Predicated region
    $region2: #{tpu_custom_call.1} parent=1 // pred_check
      _
    $region3: #{tpu_custom_call.1} parent=1 // pred_check_branch
      %33 = sbr.rel (0) target = $region5
    $region4: #{tpu_custom_call.1} parent=1 // pred_region
      _
    $region5: #{tpu_custom_call.1} parent=1 // pred_fallthru
      _
    // Predicated region
    $region6: #{tpu_custom_call.1} parent=1 // pred_check
      _
    $region7: #{tpu_custom_call.1} parent=1 // pred_check_branch
      %35 = sbr.rel (0) target = $region9
    $region8: #{tpu_custom_call.1} parent=1 // pred_region
      %s37 = ssub.s32 32, 32
      %38 = vsyncadd [#allocation4], %s37
      %s39 = sshll.u32 [#allocation3], 4
      %s40 = int_to_ptr.vmem [resolvable:$true] %s39
      %45 = dma.hbm_to_vmem [thread:$0]  %s1, 32, %s40, [#allocation4], 16, 16, 1
    $region9: #{tpu_custom_call.1} parent=1 // pred_fallthru
      _
    // Predicated region
    $region10: #{tpu_custom_call.1} parent=1 // pred_check
      _
    $region11: #{tpu_custom_call.1} parent=1 // pred_check_branch
      %47 = sbr.rel (0) target = $region13
    $region12: #{tpu_custom_call.1} parent=1 // pred_region
      _
    $region13: #{tpu_custom_call.1} parent=1 // pred_fallthru
      _
    // Predicated region
    $region14: #{tpu_custom_call.1} parent=1 // pred_check
      _
    $region15: #{tpu_custom_call.1} parent=1 // pred_check_branch
      %49 = sbr.rel (0) target = $region17
    $region16: #{tpu_custom_call.1} parent=1 // pred_region
      %s51 = ssub.s32 16, 16
      %52 = vsyncadd [#allocation6], %s51
      %55 = dma.hbm_to_smem %s3, 16, [#allocation7], [#allocation6]
    $region17: #{tpu_custom_call.1} parent=1 // pred_fallthru
      _
    // Predicated region
    $region18: #{tpu_custom_call.1} parent=1 // pred_check
      _
    $region19: #{tpu_custom_call.1} parent=1 // pred_check_branch
      %57 = sbr.rel (0) target = $region21
    $region20: #{tpu_custom_call.1} parent=1 // pred_region
      _
    $region21: #{tpu_custom_call.1} parent=1 // pred_fallthru
      _
    // Predicated region
    $region22: #{tpu_custom_call.1} parent=1 // pred_check
      _
    $region23: #{tpu_custom_call.1} parent=1 // pred_check_branch
      %59 = sbr.rel (0) target = $region25
    $region24: #{tpu_custom_call.1} parent=1 // pred_region
      %s61 = ssub.s32 16, 16
      %62 = vsyncadd [#allocation9], %s61
      %s64 = sshll.u32 [#allocation8], 4
      %s65 = int_to_ptr.vmem [resolvable:$true] %s64
      %67 = dma.hbm_to_vmem [thread:$0]  %s5, 16, %s65, [#allocation9]
    $region25: #{tpu_custom_call.1} parent=1 // pred_fallthru
      _
    // Predicated region
    $region26: #{tpu_custom_call.1} parent=1 // pred_check
      _
    $region27: #{tpu_custom_call.1} parent=1 // pred_check_branch
      %69 = sbr.rel (0) target = $region29
    $region28: #{tpu_custom_call.1} parent=1 // pred_region
      %s71 = ssub.s32 256, 256
      %72 = vsyncadd [#allocation9], %s71
      %s73 = sshll.u32 [#allocation10], 4
      %s74 = int_to_ptr.vmem [resolvable:$true] %s73
      %79 = dma.hbm_to_vmem [thread:$0]  %s6, 256, %s74, [#allocation9], 64, 64, 4
    $region29: #{tpu_custom_call.1} parent=1 // pred_fallthru
      _
    // Predicated region
    $region30: #{tpu_custom_call.1} parent=1 // pred_check
      _
    $region31: #{tpu_custom_call.1} parent=1 // pred_check_branch
      %81 = sbr.rel (0) target = $region33
    $region32: #{tpu_custom_call.1} parent=1 // pred_region
      %s83 = ssub.s32 16, 16
      %84 = vsyncadd [#allocation12], %s83
      %s86 = sshll.u32 [#allocation11], 4
      %s87 = int_to_ptr.vmem [resolvable:$true] %s86
      %89 = dma.hbm_to_vmem [thread:$0]  %s7, 16, %s87, [#allocation12]
    $region33: #{tpu_custom_call.1} parent=1 // pred_fallthru
      _
    // Predicated region
    $region34: #{tpu_custom_call.1} parent=1 // pred_check
      _
    $region35: #{tpu_custom_call.1} parent=1 // pred_check_branch
      %91 = sbr.rel (0) target = $region37
    $region36: #{tpu_custom_call.1} parent=1 // pred_region
      _
    $region37: #{tpu_custom_call.1} parent=1 // pred_fallthru
      _
    // Predicated region
    $region38: #{tpu_custom_call.1} parent=1 // pred_check
      _
    $region39: #{tpu_custom_call.1} parent=1 // pred_check_branch
      %93 = sbr.rel (0) target = $region41
    $region40: #{tpu_custom_call.1} parent=1 // pred_region
      _
    $region41: #{tpu_custom_call.1} parent=1 // pred_fallthru
      _
    // Predicated region
    $region42: #{tpu_custom_call.1} parent=1 // pred_check
      _
    $region43: #{tpu_custom_call.1} parent=1 // pred_check_branch
      %95 = sbr.rel (0) target = $region45
    $region44: #{tpu_custom_call.1} parent=1 // pred_region
      %s97 = ssub.s32 256, 256
      %98 = vsyncadd [#allocation12], %s97
      %s99 = sshll.u32 [#allocation13], 4
      %s100 = int_to_ptr.vmem [resolvable:$true] %s99
      %105 = dma.hbm_to_vmem [thread:$0]  %s10, 256, %s100, [#allocation12], 64, 64, 4
    $region45: #{tpu_custom_call.1} parent=1 // pred_fallthru
      _
    // Predicated region
    $region46: #{tpu_custom_call.1} parent=1 // pred_check
      _
    $region47: #{tpu_custom_call.1} parent=1 // pred_check_branch
      %107 = sbr.rel (0) target = $region49
    $region48: #{tpu_custom_call.1} parent=1 // pred_region
      _
    $region49: #{tpu_custom_call.1} parent=1 // pred_fallthru
      _
    // Predicated region
    $region50: #{tpu_custom_call.1} parent=1 // pred_check
      _
    $region51: #{tpu_custom_call.1} parent=1 // pred_check_branch
      %109 = sbr.rel (0) target = $region53
    $region52: #{tpu_custom_call.1} parent=1 // pred_region
      _
    $region53: #{tpu_custom_call.1} parent=1 // pred_fallthru
      _
    // Predicated region
    $region54: #{tpu_custom_call.1} parent=1 // pred_check
      _
    $region55: #{tpu_custom_call.1} parent=1 // pred_check_branch
      %111 = sbr.rel (0) target = $region57
    $region56: #{tpu_custom_call.1} parent=1 // pred_region
      _
    $region57: #{tpu_custom_call.1} parent=1 // pred_fallthru
      _
    // Predicated region
    $region58: #{tpu_custom_call.1} parent=1 // pred_check
      _
    $region59: #{tpu_custom_call.1} parent=1 // pred_check_branch
      %113 = sbr.rel (0) target = $region61
    $region60: #{tpu_custom_call.1} parent=1 // pred_region
      _
    $region61: #{tpu_custom_call.1} parent=1 // pred_fallthru
      _
    // Predicated region
    $region62: #{tpu_custom_call.1} parent=1 // pred_check
      _
    $region63: #{tpu_custom_call.1} parent=1 // pred_check_branch
      %115 = sbr.rel (0) target = $region65
    $region64: #{tpu_custom_call.1} parent=1 // pred_region
      _
    $region65: #{tpu_custom_call.1} parent=1 // pred_fallthru
      _
    // Predicated region
    $region66: #{tpu_custom_call.1} parent=1 // pred_check
      _
    $region67: #{tpu_custom_call.1} parent=1 // pred_check_branch
      %117 = sbr.rel (0) target = $region69
    $region68: #{tpu_custom_call.1} parent=1 // pred_region
      _
    $region69: #{tpu_custom_call.1} parent=1 // pred_fallthru
      _
    // Predicated region
    $region70: #{tpu_custom_call.1} parent=1 // pred_check
      _
    $region71: #{tpu_custom_call.1} parent=1 // pred_check_branch
      %119 = sbr.rel (0) target = $region73
    $region72: #{tpu_custom_call.1} parent=1 // pred_region
      _
    $region73: #{tpu_custom_call.1} parent=1 // pred_fallthru
      _
    // Predicated region
    $region74: #{tpu_custom_call.1} parent=1 // pred_check
      _
    $region75: #{tpu_custom_call.1} parent=1 // pred_check_branch
      %121 = sbr.rel (0) target = $region77
    $region76: #{tpu_custom_call.1} parent=1 // pred_region
      %122 = dma.done [#allocation4], 32
    $region77: #{tpu_custom_call.1} parent=1 // pred_fallthru
      _
    // Predicated region
    $region78: #{tpu_custom_call.1} parent=1 // pred_check
      _
    $region79: #{tpu_custom_call.1} parent=1 // pred_check_branch
      %124 = sbr.rel (0) target = $region81
    $region80: #{tpu_custom_call.1} parent=1 // pred_region
      %125 = dma.done [#allocation6], 16
    $region81: #{tpu_custom_call.1} parent=1 // pred_fallthru
      _
    // Predicated region
    $region82: #{tpu_custom_call.1} parent=1 // pred_check
      _
    $region83: #{tpu_custom_call.1} parent=1 // pred_check_branch
      %127 = sbr.rel (0) target = $region85
    $region84: #{tpu_custom_call.1} parent=1 // pred_region
      %128 = dma.done [#allocation9], 16
    $region85: #{tpu_custom_call.1} parent=1 // pred_fallthru
      _
    // Predicated region
    $region86: #{tpu_custom_call.1} parent=1 // pred_check
      _
    $region87: #{tpu_custom_call.1} parent=1 // pred_check_branch
      %130 = sbr.rel (0) target = $region89
    $region88: #{tpu_custom_call.1} parent=1 // pred_region
      %131 = dma.done [#allocation9], 256
    $region89: #{tpu_custom_call.1} parent=1 // pred_fallthru
      _
    // Predicated region
    $region90: #{tpu_custom_call.1} parent=1 // pred_check
      _
    $region91: #{tpu_custom_call.1} parent=1 // pred_check_branch
      %133 = sbr.rel (0) target = $region93
    $region92: #{tpu_custom_call.1} parent=1 // pred_region
      %134 = dma.done [#allocation12], 16
    $region93: #{tpu_custom_call.1} parent=1 // pred_fallthru
      _
    // Predicated region
    $region94: #{tpu_custom_call.1} parent=1 // pred_check
      _
    $region95: #{tpu_custom_call.1} parent=1 // pred_check_branch
      %136 = sbr.rel (0) target = $region97
    $region96: #{tpu_custom_call.1} parent=1 // pred_region
      %137 = dma.done [#allocation12], 256
    $region97: #{tpu_custom_call.1} parent=1 // pred_fallthru
      _
    %138 = sfence
    %v140 = vld [vmem:[%s0] sm:$0xf]
    %v141 = vld [vmem:[%s0 + $0x4] sm:$0xf]
    %v142 = vld [vmem:[%s0 + $0x8] sm:$0xf]
    %v143 = vld [vmem:[%s0 + $0xc] sm:$0xf]
    %v144 = vunpack.c.l.bf16 %v140
    %v145 = vunpack.c.l.bf16 %v141
    %v146 = vunpack.c.l.bf16 %v142
    %v147 = vunpack.c.l.bf16 %v143
    %s148 = sld [smem:[#allocation7]]
    %v149 = vstv %s148
    %v150 = vmul.f32 %v144, %v149
    %v151 = vmul.f32 %v145, %v149
    %v152 = vmul.f32 %v146, %v149
    %v153 = vmul.f32 %v147, %v149
    %s154 = scalar_lea.vmem %s0, 16
    %v155 = vld [vmem:[%s154] sm:$0xf]
    %v156 = vld [vmem:[%s154 + $0x4] sm:$0xf]
    %v157 = vld [vmem:[%s154 + $0x8] sm:$0xf]
    %v158 = vld [vmem:[%s154 + $0xc] sm:$0xf]
    %v159 = vunpack.c.l.bf16 %v155
    %v160 = vunpack.c.l.bf16 %v156
    %v161 = vunpack.c.l.bf16 %v157
    %v162 = vunpack.c.l.bf16 %v158
    %s163 = sld [smem:[#allocation7 + $0x1]]
    %v164 = vstv %s163
    %v165 = vmul.f32 %v159, %v164
    %v166 = vmul.f32 %v160, %v164
    %v167 = vmul.f32 %v161, %v164
    %v168 = vmul.f32 %v162, %v164
    %v169 = vadd.f32 %v150, %v165
    %v170 = vadd.f32 %v151, %v166
    %v171 = vadd.f32 %v152, %v167
    %v172 = vadd.f32 %v153, %v168
    %s173 = scalar_lea.vmem %s0, 32
    %v174 = vld [vmem:[%s173] sm:$0xf]
    %v175 = vld [vmem:[%s173 + $0x4] sm:$0xf]
    %v176 = vld [vmem:[%s173 + $0x8] sm:$0xf]
    %v177 = vld [vmem:[%s173 + $0xc] sm:$0xf]
    %v178 = vunpack.c.l.bf16 %v174
    %v179 = vunpack.c.l.bf16 %v175
    %v180 = vunpack.c.l.bf16 %v176
    %v181 = vunpack.c.l.bf16 %v177
    %s182 = sld [smem:[#allocation7 + $0x2]]
    %v183 = vstv %s182
    %v184 = vmul.f32 %v178, %v183
    %v185 = vmul.f32 %v179, %v183
    %v186 = vmul.f32 %v180, %v183
    %v187 = vmul.f32 %v181, %v183
    %v188 = vadd.f32 %v169, %v184
    %v189 = vadd.f32 %v170, %v185
    %v190 = vadd.f32 %v171, %v186
    %v191 = vadd.f32 %v172, %v187
    %v192 = vpack.c.bf16 %v189, %v188
    %v193 = vpack.c.bf16 %v191, %v190
    %v194 = vld [vmem:[%s4] sm:$0xf]
    %v195 = vld [vmem:[%s4 + $0x4] sm:$0xf]
    %v196 = vld [vmem:[%s4 + $0x8] sm:$0xf]
    %v197 = vld [vmem:[%s4 + $0xc] sm:$0xf]
    %v198 = vld [vmem:[#allocation8] sm:$0x1]
    %v200 = vlaneseq
    %v201 = vshrl.u32 %v200, 7
    %v202 = vsub.s32 0, %v201
    %v203 = vrot.slane %v198, %v202
    %v209 = vunpack.c.l.b16 %v194
    %v210 = vunpack.c.l.b16 %v195
    %v211 = vunpack.c.l.b16 %v196
    %v212 = vunpack.c.l.b16 %v197
    %v213 = vpack.c.b16 %v210, %v209
    %v214 = vpack.c.b16 %v212, %v211
    %vm217 = vcmask 261120
    %v219 = vsel %vm217, %v192, 0
    %v222 = vsel %vm217, %v193, 0
    %224 = vmatprep.subr.bf16.mxu0 0
    %225 = vmatpush1.bf16.msra.mxu0 %v213
    %226 = vmatprep.subr.bf16.mxu0 0
    %227 = vmatpush1.bf16.msra.mxu0 %v214
    %228 = vmatprep.subr.bf16.mxu0 0
    %229 = vmatpush1.bf16.msra.mxu0 0
    %230 = vmatprep.subr.bf16.mxu0 0
    %231 = vmatpush1.bf16.msra.mxu0 0
    %232 = vmatprep.subr.bf16.mxu0 0
    %233 = vmatpush1.bf16.msra.mxu0 0
    %234 = vmatprep.subr.bf16.mxu0 0
    %235 = vmatpush1.bf16.msra.mxu0 0
    %236 = vmatprep.subr.bf16.mxu0 0
    %237 = vmatpush1.bf16.msra.mxu0 0
    %238 = vmatprep.subr.bf16.mxu0 0
    %239 = vmatpush1.bf16.msra.mxu0 0
    %240 = vmatprep.subr.bf16.mxu0 0
    %241 = vmatpush1.bf16.msra.mxu0 0
    %242 = vmatprep.subr.bf16.mxu0 0
    %243 = vmatpush1.bf16.msra.mxu0 0
    %244 = vmatprep.subr.bf16.mxu0 0
    %245 = vmatpush1.bf16.msra.mxu0 0
    %246 = vmatprep.subr.bf16.mxu0 0
    %247 = vmatpush1.bf16.msra.mxu0 0
    %248 = vmatprep.subr.bf16.mxu0 0
    %249 = vmatpush1.bf16.msra.mxu0 0
    %250 = vmatprep.subr.bf16.mxu0 0
    %251 = vmatpush1.bf16.msra.mxu0 0
    %252 = vmatprep.subr.bf16.mxu0 0
    %253 = vmatpush1.bf16.msra.mxu0 0
    %254 = vmatprep.subr.bf16.mxu0 0
    %255 = vmatpush1.bf16.msra.mxu0 0
    %256 = vmatprep.mubr.bf16.mxu0 0
    %257 = vmatmul.mubr.bf16.gmra.mrb[0].mxu0 %v219
    %v258 = vpop.f32.mrb[0].mxu0
    %v259 = vadd.f32 %v203, %v258
    %v260 = vpop.f32.mrb[0].mxu0
    %v261 = vpop.f32.mrb[0].mxu0
    %v262 = vadd.f32 %v203, %v261
    %v263 = vpop.f32.mrb[0].mxu0
    %264 = vmatprep.mubr.bf16.mxu0 0
    %265 = vmatmul.mubr.bf16.gmra.mrb[0].mxu0 %v222
    %v266 = vpop.f32.mrb[0].mxu0
    %v267 = vadd.f32 %v203, %v266
    %v268 = vpop.f32.mrb[0].mxu0
    %v269 = vpop.f32.mrb[0].mxu0
    %v270 = vadd.f32 %v203, %v269
    %v271 = vpop.f32.mrb[0].mxu0
    %272 = vdwg.mxu0
    %v273 = vld [vmem:[%s2] sm:$0x1]
    %v274 = vld [vmem:[%s2 + $0x1] sm:$0x1]
    %v275 = vld [vmem:[%s2 + $0x2] sm:$0x1]
    %v276 = vld [vmem:[%s2 + $0x3] sm:$0x1]
    %v277 = vpack.c.bf16 %v262, %v259
    %v279 = vpack.i.b16 %v273, %v273
    %v281 = vlaneseq
    %v282 = vshrl.u32 %v281, 7
    %v283 = vsub.s32 0, %v282
    %v284 = vrot.slane %v279, %v283
    %v286 = vpack.i.b16 %v274, %v274
    %v288 = vlaneseq
    %v289 = vshrl.u32 %v288, 7
    %v290 = vsub.s32 0, %v289
    %v291 = vrot.slane %v286, %v290
    %v293 = vpack.i.b16 %v275, %v275
    %v295 = vlaneseq
    %v296 = vshrl.u32 %v295, 7
    %v297 = vsub.s32 0, %v296
    %v298 = vrot.slane %v293, %v297
    %v300 = vpack.i.b16 %v276, %v276
    %v302 = vlaneseq
    %v303 = vshrl.u32 %v302, 7
    %v304 = vsub.s32 0, %v303
    %v305 = vrot.slane %v300, %v304
    %v306 = vmul.bf16 %v277, %v284
    %v307 = vmul.bf16 %v277, %v291
    %v308 = vmul.bf16 %v277, %v298
    %v309 = vmul.bf16 %v277, %v305
    %v310 = vld [vmem:[#allocation3] sm:$0x1]
    %v312 = vlaneseq
    %v313 = vshrl.u32 %v312, 7
    %v314 = vsub.s32 0, %v313
    %v315 = vrot.slane %v310, %v314
    %318 = vrot.lane.b32.xlu0 %v277, 96
    %v319 = vpop.permute.xlu0 %318
    %v321 = vsel %vm217, %v306, 0
    %v324 = vsel %vm217, %v307, 0
    %v327 = vsel %vm217, %v308, 0
    %v330 = vsel %vm217, %v309, 0
    %v333 = vsel %vm217, %v319, 0
    %335 = vmatprep.subr.bf16.mxu0 0
    %336 = vmatpush1.bf16.xpose.msra.mxu0 %v333
    %337 = vmatprep.subr.bf16.mxu0 0
    %338 = vmatpush1.bf16.xpose.msra.mxu0 0
    %339 = vmatprep.subr.bf16.mxu0 0
    %340 = vmatpush1.bf16.xpose.msra.mxu0 0
    %341 = vmatprep.subr.bf16.mxu0 0
    %342 = vmatpush1.bf16.xpose.msra.mxu0 0
    %343 = vmatprep.subr.bf16.mxu0 0
    %344 = vmatpush1.bf16.xpose.msra.mxu0 0
    %345 = vmatprep.subr.bf16.mxu0 0
    %346 = vmatpush1.bf16.xpose.msra.mxu0 0
    %347 = vmatprep.subr.bf16.mxu0 0
    %348 = vmatpush1.bf16.xpose.msra.mxu0 0
    %349 = vmatprep.subr.bf16.mxu0 0
    %350 = vmatpush1.bf16.xpose.msra.mxu0 0
    %351 = vmatprep.subr.bf16.mxu0 0
    %352 = vmatpush1.bf16.xpose.msra.mxu0 0
    %353 = vmatprep.subr.bf16.mxu0 0
    %354 = vmatpush1.bf16.xpose.msra.mxu0 0
    %355 = vmatprep.subr.bf16.mxu0 0
    %356 = vmatpush1.bf16.xpose.msra.mxu0 0
    %357 = vmatprep.subr.bf16.mxu0 0
    %358 = vmatpush1.bf16.xpose.msra.mxu0 0
    %359 = vmatprep.subr.bf16.mxu0 0
    %360 = vmatpush1.bf16.xpose.msra.mxu0 0
    %361 = vmatprep.subr.bf16.mxu0 0
    %362 = vmatpush1.bf16.xpose.msra.mxu0 0
    %363 = vmatprep.subr.bf16.mxu0 0
    %364 = vmatpush1.bf16.xpose.msra.mxu0 0
    %365 = vmatprep.subr.bf16.mxu0 0
    %366 = vmatpush1.bf16.xpose.msra.mxu0 0
    %367 = vmatprep.mubr.bf16.mxu0 0
    %368 = vmatmul.mubr.bf16.gmra.mrb[0].mxu0 %v321
    %v369 = vpop.f32.mrb[0].mxu0
    %v370 = vadd.f32 %v315, %v369
    %v371 = vpop.f32.mrb[0].mxu0
    %v372 = vpop.f32.mrb[0].mxu0
    %v373 = vadd.f32 %v315, %v372
    %v374 = vpop.f32.mrb[0].mxu0
    %375 = vmatprep.mubr.bf16.mxu0 0
    %376 = vmatmul.mubr.bf16.gmra.mrb[0].mxu0 %v324
    %v377 = vpop.f32.mrb[0].mxu0
    %v378 = vadd.f32 %v315, %v377
    %v379 = vpop.f32.mrb[0].mxu0
    %v380 = vpop.f32.mrb[0].mxu0
    %v381 = vadd.f32 %v315, %v380
    %v382 = vpop.f32.mrb[0].mxu0
    %383 = vmatprep.mubr.bf16.mxu0 0
    %384 = vmatmul.mubr.bf16.gmra.mrb[0].mxu0 %v327
    %v385 = vpop.f32.mrb[0].mxu0
    %v386 = vadd.f32 %v315, %v385
    %v387 = vpop.f32.mrb[0].mxu0
    %v388 = vpop.f32.mrb[0].mxu0
    %v389 = vadd.f32 %v315, %v388
    %v390 = vpop.f32.mrb[0].mxu0
    %391 = vmatprep.mubr.bf16.mxu0 0
    %392 = vmatmul.mubr.bf16.gmra.mrb[0].mxu0 %v330
    %v393 = vpop.f32.mrb[0].mxu0
    %v394 = vadd.f32 %v315, %v393
    %v395 = vpop.f32.mrb[0].mxu0
    %v396 = vpop.f32.mrb[0].mxu0
    %v397 = vadd.f32 %v315, %v396
    %v398 = vpop.f32.mrb[0].mxu0
    %399 = vdwg.mxu0
    %vm400 = vcmask 130048
    %v401 = vsel %vm400, %v370, -inf
    %402 = vmax.xlane.f32.xlu0 %v401
    %v403 = vpop.xlane.xlu0 %402
    %v404 = vsel %vm400, %v373, -inf
    %405 = vmax.xlane.f32.xlu0 %v404
    %v406 = vpop.xlane.xlu0 %405
    %v407 = vsel %vm400, %v378, -inf
    %408 = vmax.xlane.f32.xlu0 %v407
    %v409 = vpop.xlane.xlu0 %408
    %v410 = vsel %vm400, %v381, -inf
    %411 = vmax.xlane.f32.xlu0 %v410
    %v412 = vpop.xlane.xlu0 %411
    %v413 = vsel %vm400, %v386, -inf
    %414 = vmax.xlane.f32.xlu0 %v413
    %v415 = vpop.xlane.xlu0 %414
    %v416 = vsel %vm400, %v389, -inf
    %417 = vmax.xlane.f32.xlu0 %v416
    %v418 = vpop.xlane.xlu0 %417
    %v419 = vsel %vm400, %v394, -inf
    %420 = vmax.xlane.f32.xlu0 %v419
    %v421 = vpop.xlane.xlu0 %420
    %v422 = vsel %vm400, %v397, -inf
    %423 = vmax.xlane.f32.xlu0 %v422
    %v424 = vpop.xlane.xlu0 %423
    %v425 = vsub.f32 %v370, %v403
    %v426 = vsub.f32 %v373, %v406
    %v427 = vsub.f32 %v378, %v409
    %v428 = vsub.f32 %v381, %v412
    %v429 = vsub.f32 %v386, %v415
    %v430 = vsub.f32 %v389, %v418
    %v431 = vsub.f32 %v394, %v421
    %v432 = vsub.f32 %v397, %v424
    %v433 = vmul.f32 %v425, 1.442695
    %v434 = vpow.pop %v433
    %v435 = vmul.f32 %v426, 1.442695
    %v436 = vpow.pop %v435
    %v437 = vmul.f32 %v427, 1.442695
    %v438 = vpow.pop %v437
    %v439 = vmul.f32 %v428, 1.442695
    %v440 = vpow.pop %v439
    %v441 = vmul.f32 %v429, 1.442695
    %v442 = vpow.pop %v441
    %v443 = vmul.f32 %v430, 1.442695
    %v444 = vpow.pop %v443
    %v445 = vmul.f32 %v431, 1.442695
    %v446 = vpow.pop %v445
    %v447 = vmul.f32 %v432, 1.442695
    %v448 = vpow.pop %v447
    %v449 = vsel %vm400, %v434, 0.0
    %450 = vadd.xlane.f32.xlu0 %v449
    %v451 = vpop.xlane.xlu0 %450
    %v452 = vsel %vm400, %v436, 0.0
    %453 = vadd.xlane.f32.xlu0 %v452
    %v454 = vpop.xlane.xlu0 %453
    %v455 = vsel %vm400, %v438, 0.0
    %456 = vadd.xlane.f32.xlu0 %v455
    %v457 = vpop.xlane.xlu0 %456
    %v458 = vsel %vm400, %v440, 0.0
    %459 = vadd.xlane.f32.xlu0 %v458
    %v460 = vpop.xlane.xlu0 %459
    %v461 = vsel %vm400, %v442, 0.0
    %462 = vadd.xlane.f32.xlu0 %v461
    %v463 = vpop.xlane.xlu0 %462
    %v464 = vsel %vm400, %v444, 0.0
    %465 = vadd.xlane.f32.xlu0 %v464
    %v466 = vpop.xlane.xlu0 %465
    %v467 = vsel %vm400, %v446, 0.0
    %468 = vadd.xlane.f32.xlu0 %v467
    %v469 = vpop.xlane.xlu0 %468
    %v470 = vsel %vm400, %v448, 0.0
    %471 = vadd.xlane.f32.xlu0 %v470
    %v472 = vpop.xlane.xlu0 %471
    %v473 = vrcp.pop %v451
    %v474 = vrcp.pop %v454
    %v475 = vrcp.pop %v457
    %v476 = vrcp.pop %v460
    %v477 = vrcp.pop %v463
    %v478 = vrcp.pop %v466
    %v479 = vrcp.pop %v469
    %v480 = vrcp.pop %v472
    %v481 = vmul.f32 %v434, %v473
    %v482 = vmul.f32 %v436, %v474
    %v483 = vmul.f32 %v438, %v475
    %v484 = vmul.f32 %v440, %v476
    %v485 = vmul.f32 %v442, %v477
    %v486 = vmul.f32 %v444, %v478
    %v487 = vmul.f32 %v446, %v479
    %v488 = vmul.f32 %v448, %v480
    %v489 = vsel %vm400, %v481, 0.0
    %v490 = vsel %vm400, %v483, 0.0
    %v491 = vadd.f32 %v489, %v490
    %v492 = vsel %vm400, %v485, 0.0
    %v493 = vadd.f32 %v491, %v492
    %v494 = vsel %vm400, %v487, 0.0
    %v495 = vadd.f32 %v493, %v494
    %v496 = vsel %vm400, %v482, 0.0
    %v497 = vsel %vm400, %v484, 0.0
    %v498 = vadd.f32 %v496, %v497
    %v499 = vsel %vm400, %v486, 0.0
    %v500 = vadd.f32 %v498, %v499
    %v501 = vsel %vm400, %v488, 0.0
    %v502 = vadd.f32 %v500, %v501
    %v503 = vmul.f32 %v495, 0.25
    %v504 = vmul.f32 %v502, 0.25
    %505 = vst.msk [vmem:[#allocation17] sm:$0xff] %vm400, %v503
    %506 = vst.msk [vmem:[#allocation17 + $0x8] sm:$0xff] %vm400, %v504
    %v507 = vpack.c.bf16 %v482, %v481
    %v508 = vpack.c.bf16 %v484, %v483
    %v509 = vpack.c.bf16 %v486, %v485
    %v510 = vpack.c.bf16 %v488, %v487
    %511 = vrot.lane.b32.xlu0 %v277, 64
    %v512 = vpop.permute.xlu0 %511
    %v515 = vsel %vm400, %v507, 0
    %v518 = vsel %vm400, %v508, 0
    %v521 = vsel %vm400, %v509, 0
    %v524 = vsel %vm400, %v510, 0
    %526 = vmatprep.subr.bf16.mxu0 0
    %527 = vmatpush1.bf16.msra.mxu0 %v512
    %528 = vmatprep.subr.bf16.mxu0 0
    %529 = vmatpush1.bf16.msra.mxu0 0
    %530 = vmatprep.subr.bf16.mxu0 0
    %531 = vmatpush1.bf16.msra.mxu0 0
    %532 = vmatprep.subr.bf16.mxu0 0
    %533 = vmatpush1.bf16.msra.mxu0 0
    %534 = vmatprep.subr.bf16.mxu0 0
    %535 = vmatpush1.bf16.msra.mxu0 0
    %536 = vmatprep.subr.bf16.mxu0 0
    %537 = vmatpush1.bf16.msra.mxu0 0
    %538 = vmatprep.subr.bf16.mxu0 0
    %539 = vmatpush1.bf16.msra.mxu0 0
    %540 = vmatprep.subr.bf16.mxu0 0
    %541 = vmatpush1.bf16.msra.mxu0 0
    %542 = vmatprep.subr.bf16.mxu0 0
    %543 = vmatpush1.bf16.msra.mxu0 0
    %544 = vmatprep.subr.bf16.mxu0 0
    %545 = vmatpush1.bf16.msra.mxu0 0
    %546 = vmatprep.subr.bf16.mxu0 0
    %547 = vmatpush1.bf16.msra.mxu0 0
    %548 = vmatprep.subr.bf16.mxu0 0
    %549 = vmatpush1.bf16.msra.mxu0 0
    %550 = vmatprep.subr.bf16.mxu0 0
    %551 = vmatpush1.bf16.msra.mxu0 0
    %552 = vmatprep.subr.bf16.mxu0 0
    %553 = vmatpush1.bf16.msra.mxu0 0
    %554 = vmatprep.subr.bf16.mxu0 0
    %555 = vmatpush1.bf16.msra.mxu0 0
    %556 = vmatprep.subr.bf16.mxu0 0
    %557 = vmatpush1.bf16.msra.mxu0 0
    %558 = vmatprep.mubr.bf16.mxu0 0
    %559 = vmatmul.mubr.bf16.gmra.mrb[0].mxu0 %v515
    %v560 = vpop.f32.mrb[0].mxu0
    %v561 = vadd.f32 0.0, %v560
    %v562 = vpop.f32.mrb[0].mxu0
    %v563 = vpop.f32.mrb[0].mxu0
    %v564 = vadd.f32 0.0, %v563
    %v565 = vpop.f32.mrb[0].mxu0
    %566 = vmatprep.mubr.bf16.mxu0 0
    %567 = vmatmul.mubr.bf16.gmra.mrb[0].mxu0 %v518
    %v568 = vpop.f32.mrb[0].mxu0
    %v569 = vadd.f32 0.0, %v568
    %v570 = vpop.f32.mrb[0].mxu0
    %v571 = vpop.f32.mrb[0].mxu0
    %v572 = vadd.f32 0.0, %v571
    %v573 = vpop.f32.mrb[0].mxu0
    %574 = vmatprep.mubr.bf16.mxu0 0
    %575 = vmatmul.mubr.bf16.gmra.mrb[0].mxu0 %v521
    %v576 = vpop.f32.mrb[0].mxu0
    %v577 = vadd.f32 0.0, %v576
    %v578 = vpop.f32.mrb[0].mxu0
    %v579 = vpop.f32.mrb[0].mxu0
    %v580 = vadd.f32 0.0, %v579
    %v581 = vpop.f32.mrb[0].mxu0
    %582 = vmatprep.mubr.bf16.mxu0 0
    %583 = vmatmul.mubr.bf16.gmra.mrb[0].mxu0 %v524
    %v584 = vpop.f32.mrb[0].mxu0
    %v585 = vadd.f32 0.0, %v584
    %v586 = vpop.f32.mrb[0].mxu0
    %v587 = vpop.f32.mrb[0].mxu0
    %v588 = vadd.f32 0.0, %v587
    %v589 = vpop.f32.mrb[0].mxu0
    %590 = vdwg.mxu0
    %v591 = vunpack.c.l.bf16 %v273
    %v592 = vunpack.c.l.bf16 %v274
    %v593 = vunpack.c.l.bf16 %v275
    %v594 = vunpack.c.l.bf16 %v276
    %v595 = vlaneseq
    %v596 = vshrl.u32 %v595, 7
    %v597 = vsub.s32 0, %v596
    %v598 = vrot.slane %v591, %v597
    %v599 = vlaneseq
    %v600 = vshrl.u32 %v599, 7
    %v601 = vsub.s32 0, %v600
    %v602 = vrot.slane %v592, %v601
    %v603 = vlaneseq
    %v604 = vshrl.u32 %v603, 7
    %v605 = vsub.s32 0, %v604
    %v606 = vrot.slane %v593, %v605
    %v607 = vlaneseq
    %v608 = vshrl.u32 %v607, 7
    %v609 = vsub.s32 0, %v608
    %v610 = vrot.slane %v594, %v609
    %v611 = vmul.f32 %v561, %v598
    %v612 = vmul.f32 %v564, %v598
    %v613 = vmul.f32 %v569, %v602
    %v614 = vmul.f32 %v572, %v602
    %v615 = vmul.f32 %v577, %v606
    %v616 = vmul.f32 %v580, %v606
    %v617 = vmul.f32 %v585, %v610
    %v618 = vmul.f32 %v588, %v610
    %v619 = vsel %vm217, %v611, 0.0
    %v620 = vsel %vm217, %v613, 0.0
    %v621 = vadd.f32 %v619, %v620
    %v622 = vsel %vm217, %v615, 0.0
    %v623 = vadd.f32 %v621, %v622
    %v624 = vsel %vm217, %v617, 0.0
    %v625 = vadd.f32 %v623, %v624
    %v626 = vsel %vm217, %v612, 0.0
    %v627 = vsel %vm217, %v614, 0.0
    %v628 = vadd.f32 %v626, %v627
    %v629 = vsel %vm217, %v616, 0.0
    %v630 = vadd.f32 %v628, %v629
    %v631 = vsel %vm217, %v618, 0.0
    %v632 = vadd.f32 %v630, %v631
    %633 = vst.msk [vmem:[#allocation2] sm:$0xff] %vm217, %v625
    %634 = vst.msk [vmem:[#allocation2 + $0x8] sm:$0xff] %vm217, %v632
    %v635 = vpack.c.bf16 %v270, %v267
    %v636 = vmul.bf16 %v635, %v284
    %v637 = vmul.bf16 %v635, %v291
    %v638 = vmul.bf16 %v635, %v298
    %v639 = vmul.bf16 %v635, %v305
    %s640 = scalar_lea.vmem [#allocation3], 1
    %v641 = vld [vmem:[%s640] sm:$0x1]
    %v643 = vlaneseq
    %v644 = vshrl.u32 %v643, 7
    %v645 = vsub.s32 0, %v644
    %v646 = vrot.slane %v641, %v645
    %649 = vrot.lane.b32.xlu0 %v635, 96
    %v650 = vpop.permute.xlu0 %649
    %v652 = vsel %vm217, %v636, 0
    %v655 = vsel %vm217, %v637, 0
    %v658 = vsel %vm217, %v638, 0
    %v661 = vsel %vm217, %v639, 0
    %v664 = vsel %vm217, %v650, 0
    %666 = vmatprep.subr.bf16.mxu0 0
    %667 = vmatpush1.bf16.xpose.msra.mxu0 %v664
    %668 = vmatprep.subr.bf16.mxu0 0
    %669 = vmatpush1.bf16.xpose.msra.mxu0 0
    %670 = vmatprep.subr.bf16.mxu0 0
    %671 = vmatpush1.bf16.xpose.msra.mxu0 0
    %672 = vmatprep.subr.bf16.mxu0 0
    %673 = vmatpush1.bf16.xpose.msra.mxu0 0
    %674 = vmatprep.subr.bf16.mxu0 0
    %675 = vmatpush1.bf16.xpose.msra.mxu0 0
    %676 = vmatprep.subr.bf16.mxu0 0
    %677 = vmatpush1.bf16.xpose.msra.mxu0 0
    %678 = vmatprep.subr.bf16.mxu0 0
    %679 = vmatpush1.bf16.xpose.msra.mxu0 0
    %680 = vmatprep.subr.bf16.mxu0 0
    %681 = vmatpush1.bf16.xpose.msra.mxu0 0
    %682 = vmatprep.subr.bf16.mxu0 0
    %683 = vmatpush1.bf16.xpose.msra.mxu0 0
    %684 = vmatprep.subr.bf16.mxu0 0
    %685 = vmatpush1.bf16.xpose.msra.mxu0 0
    %686 = vmatprep.subr.bf16.mxu0 0
    %687 = vmatpush1.bf16.xpose.msra.mxu0 0
    %688 = vmatprep.subr.bf16.mxu0 0
    %689 = vmatpush1.bf16.xpose.msra.mxu0 0
    %690 = vmatprep.subr.bf16.mxu0 0
    %691 = vmatpush1.bf16.xpose.msra.mxu0 0
    %692 = vmatprep.subr.bf16.mxu0 0
    %693 = vmatpush1.bf16.xpose.msra.mxu0 0
    %694 = vmatprep.subr.bf16.mxu0 0
    %695 = vmatpush1.bf16.xpose.msra.mxu0 0
    %696 = vmatprep.subr.bf16.mxu0 0
    %697 = vmatpush1.bf16.xpose.msra.mxu0 0
    %698 = vmatprep.mubr.bf16.mxu0 0
    %699 = vmatmul.mubr.bf16.gmra.mrb[0].mxu0 %v652
    %v700 = vpop.f32.mrb[0].mxu0
    %v701 = vadd.f32 %v646, %v700
    %v702 = vpop.f32.mrb[0].mxu0
    %v703 = vpop.f32.mrb[0].mxu0
    %v704 = vadd.f32 %v646, %v703
    %v705 = vpop.f32.mrb[0].mxu0
    %706 = vmatprep.mubr.bf16.mxu0 0
    %707 = vmatmul.mubr.bf16.gmra.mrb[0].mxu0 %v655
    %v708 = vpop.f32.mrb[0].mxu0
    %v709 = vadd.f32 %v646, %v708
    %v710 = vpop.f32.mrb[0].mxu0
    %v711 = vpop.f32.mrb[0].mxu0
    %v712 = vadd.f32 %v646, %v711
    %v713 = vpop.f32.mrb[0].mxu0
    %714 = vmatprep.mubr.bf16.mxu0 0
    %715 = vmatmul.mubr.bf16.gmra.mrb[0].mxu0 %v658
    %v716 = vpop.f32.mrb[0].mxu0
    %v717 = vadd.f32 %v646, %v716
    %v718 = vpop.f32.mrb[0].mxu0
    %v719 = vpop.f32.mrb[0].mxu0
    %v720 = vadd.f32 %v646, %v719
    %v721 = vpop.f32.mrb[0].mxu0
    %722 = vmatprep.mubr.bf16.mxu0 0
    %723 = vmatmul.mubr.bf16.gmra.mrb[0].mxu0 %v661
    %v724 = vpop.f32.mrb[0].mxu0
    %v725 = vadd.f32 %v646, %v724
    %v726 = vpop.f32.mrb[0].mxu0
    %v727 = vpop.f32.mrb[0].mxu0
    %v728 = vadd.f32 %v646, %v727
    %v729 = vpop.f32.mrb[0].mxu0
    %730 = vdwg.mxu0
    %v731 = vsel %vm400, %v701, -inf
    %732 = vmax.xlane.f32.xlu0 %v731
    %v733 = vpop.xlane.xlu0 %732
    %v734 = vsel %vm400, %v704, -inf
    %735 = vmax.xlane.f32.xlu0 %v734
    %v736 = vpop.xlane.xlu0 %735
    %v737 = vsel %vm400, %v709, -inf
    %738 = vmax.xlane.f32.xlu0 %v737
    %v739 = vpop.xlane.xlu0 %738
    %v740 = vsel %vm400, %v712, -inf
    %741 = vmax.xlane.f32.xlu0 %v740
    %v742 = vpop.xlane.xlu0 %741
    %v743 = vsel %vm400, %v717, -inf
    %744 = vmax.xlane.f32.xlu0 %v743
    %v745 = vpop.xlane.xlu0 %744
    %v746 = vsel %vm400, %v720, -inf
    %747 = vmax.xlane.f32.xlu0 %v746
    %v748 = vpop.xlane.xlu0 %747
    %v749 = vsel %vm400, %v725, -inf
    %750 = vmax.xlane.f32.xlu0 %v749
    %v751 = vpop.xlane.xlu0 %750
    %v752 = vsel %vm400, %v728, -inf
    %753 = vmax.xlane.f32.xlu0 %v752
    %v754 = vpop.xlane.xlu0 %753
    %v755 = vsub.f32 %v701, %v733
    %v756 = vsub.f32 %v704, %v736
    %v757 = vsub.f32 %v709, %v739
    %v758 = vsub.f32 %v712, %v742
    %v759 = vsub.f32 %v717, %v745
    %v760 = vsub.f32 %v720, %v748
    %v761 = vsub.f32 %v725, %v751
    %v762 = vsub.f32 %v728, %v754
    %v763 = vmul.f32 %v755, 1.442695
    %v764 = vpow.pop %v763
    %v765 = vmul.f32 %v756, 1.442695
    %v766 = vpow.pop %v765
    %v767 = vmul.f32 %v757, 1.442695
    %v768 = vpow.pop %v767
    %v769 = vmul.f32 %v758, 1.442695
    %v770 = vpow.pop %v769
    %v771 = vmul.f32 %v759, 1.442695
    %v772 = vpow.pop %v771
    %v773 = vmul.f32 %v760, 1.442695
    %v774 = vpow.pop %v773
    %v775 = vmul.f32 %v761, 1.442695
    %v776 = vpow.pop %v775
    %v777 = vmul.f32 %v762, 1.442695
    %v778 = vpow.pop %v777
    %v779 = vsel %vm400, %v764, 0.0
    %780 = vadd.xlane.f32.xlu0 %v779
    %v781 = vpop.xlane.xlu0 %780
    %v782 = vsel %vm400, %v766, 0.0
    %783 = vadd.xlane.f32.xlu0 %v782
    %v784 = vpop.xlane.xlu0 %783
    %v785 = vsel %vm400, %v768, 0.0
    %786 = vadd.xlane.f32.xlu0 %v785
    %v787 = vpop.xlane.xlu0 %786
    %v788 = vsel %vm400, %v770, 0.0
    %789 = vadd.xlane.f32.xlu0 %v788
    %v790 = vpop.xlane.xlu0 %789
    %v791 = vsel %vm400, %v772, 0.0
    %792 = vadd.xlane.f32.xlu0 %v791
    %v793 = vpop.xlane.xlu0 %792
    %v794 = vsel %vm400, %v774, 0.0
    %795 = vadd.xlane.f32.xlu0 %v794
    %v796 = vpop.xlane.xlu0 %795
    %v797 = vsel %vm400, %v776, 0.0
    %798 = vadd.xlane.f32.xlu0 %v797
    %v799 = vpop.xlane.xlu0 %798
    %v800 = vsel %vm400, %v778, 0.0
    %801 = vadd.xlane.f32.xlu0 %v800
    %v802 = vpop.xlane.xlu0 %801
    %v803 = vrcp.pop %v781
    %v804 = vrcp.pop %v784
    %v805 = vrcp.pop %v787
    %v806 = vrcp.pop %v790
    %v807 = vrcp.pop %v793
    %v808 = vrcp.pop %v796
    %v809 = vrcp.pop %v799
    %v810 = vrcp.pop %v802
    %v811 = vmul.f32 %v764, %v803
    %v812 = vmul.f32 %v766, %v804
    %v813 = vmul.f32 %v768, %v805
    %v814 = vmul.f32 %v770, %v806
    %v815 = vmul.f32 %v772, %v807
    %v816 = vmul.f32 %v774, %v808
    %v817 = vmul.f32 %v776, %v809
    %v818 = vmul.f32 %v778, %v810
    %v819 = vsel %vm400, %v811, 0.0
    %v820 = vsel %vm400, %v813, 0.0
    %v821 = vadd.f32 %v819, %v820
    %v822 = vsel %vm400, %v815, 0.0
    %v823 = vadd.f32 %v821, %v822
    %v824 = vsel %vm400, %v817, 0.0
    %v825 = vadd.f32 %v823, %v824
    %v826 = vsel %vm400, %v812, 0.0
    %v827 = vsel %vm400, %v814, 0.0
    %v828 = vadd.f32 %v826, %v827
    %v829 = vsel %vm400, %v816, 0.0
    %v830 = vadd.f32 %v828, %v829
    %v831 = vsel %vm400, %v818, 0.0
    %v832 = vadd.f32 %v830, %v831
    %v833 = vmul.f32 %v825, 0.25
    %v834 = vmul.f32 %v832, 0.25
    %s835 = scalar_lea.vmem [#allocation17], 16
    %836 = vst.msk [vmem:[%s835] sm:$0xff] %vm400, %v833
    %837 = vst.msk [vmem:[%s835 + $0x8] sm:$0xff] %vm400, %v834
    %v838 = vpack.c.bf16 %v812, %v811
    %v839 = vpack.c.bf16 %v814, %v813
    %v840 = vpack.c.bf16 %v816, %v815
    %v841 = vpack.c.bf16 %v818, %v817
    %842 = vrot.lane.b32.xlu0 %v635, 64
    %v843 = vpop.permute.xlu0 %842
    %v846 = vsel %vm400, %v838, 0
    %v849 = vsel %vm400, %v839, 0
    %v852 = vsel %vm400, %v840, 0
    %v855 = vsel %vm400, %v841, 0
    %857 = vmatprep.subr.bf16.mxu0 0
    %858 = vmatpush1.bf16.msra.mxu0 %v843
    %859 = vmatprep.subr.bf16.mxu0 0
    %860 = vmatpush1.bf16.msra.mxu0 0
    %861 = vmatprep.subr.bf16.mxu0 0
    %862 = vmatpush1.bf16.msra.mxu0 0
    %863 = vmatprep.subr.bf16.mxu0 0
    %864 = vmatpush1.bf16.msra.mxu0 0
    %865 = vmatprep.subr.bf16.mxu0 0
    %866 = vmatpush1.bf16.msra.mxu0 0
    %867 = vmatprep.subr.bf16.mxu0 0
    %868 = vmatpush1.bf16.msra.mxu0 0
    %869 = vmatprep.subr.bf16.mxu0 0
    %870 = vmatpush1.bf16.msra.mxu0 0
    %871 = vmatprep.subr.bf16.mxu0 0
    %872 = vmatpush1.bf16.msra.mxu0 0
    %873 = vmatprep.subr.bf16.mxu0 0
    %874 = vmatpush1.bf16.msra.mxu0 0
    %875 = vmatprep.subr.bf16.mxu0 0
    %876 = vmatpush1.bf16.msra.mxu0 0
    %877 = vmatprep.subr.bf16.mxu0 0
    %878 = vmatpush1.bf16.msra.mxu0 0
    %879 = vmatprep.subr.bf16.mxu0 0
    %880 = vmatpush1.bf16.msra.mxu0 0
    %881 = vmatprep.subr.bf16.mxu0 0
    %882 = vmatpush1.bf16.msra.mxu0 0
    %883 = vmatprep.subr.bf16.mxu0 0
    %884 = vmatpush1.bf16.msra.mxu0 0
    %885 = vmatprep.subr.bf16.mxu0 0
    %886 = vmatpush1.bf16.msra.mxu0 0
    %887 = vmatprep.subr.bf16.mxu0 0
    %888 = vmatpush1.bf16.msra.mxu0 0
    %889 = vmatprep.mubr.bf16.mxu0 0
    %890 = vmatmul.mubr.bf16.gmra.mrb[0].mxu0 %v846
    %v891 = vpop.f32.mrb[0].mxu0
    %v892 = vadd.f32 0.0, %v891
    %v893 = vpop.f32.mrb[0].mxu0
    %v894 = vpop.f32.mrb[0].mxu0
    %v895 = vadd.f32 0.0, %v894
    %v896 = vpop.f32.mrb[0].mxu0
    %897 = vmatprep.mubr.bf16.mxu0 0
    %898 = vmatmul.mubr.bf16.gmra.mrb[0].mxu0 %v849
    %v899 = vpop.f32.mrb[0].mxu0
    %v900 = vadd.f32 0.0, %v899
    %v901 = vpop.f32.mrb[0].mxu0
    %v902 = vpop.f32.mrb[0].mxu0
    %v903 = vadd.f32 0.0, %v902
    %v904 = vpop.f32.mrb[0].mxu0
    %905 = vmatprep.mubr.bf16.mxu0 0
    %906 = vmatmul.mubr.bf16.gmra.mrb[0].mxu0 %v852
    %v907 = vpop.f32.mrb[0].mxu0
    %v908 = vadd.f32 0.0, %v907
    %v909 = vpop.f32.mrb[0].mxu0
    %v910 = vpop.f32.mrb[0].mxu0
    %v911 = vadd.f32 0.0, %v910
    %v912 = vpop.f32.mrb[0].mxu0
    %913 = vmatprep.mubr.bf16.mxu0 0
    %914 = vmatmul.mubr.bf16.gmra.mrb[0].mxu0 %v855
    %v915 = vpop.f32.mrb[0].mxu0
    %v916 = vadd.f32 0.0, %v915
    %v917 = vpop.f32.mrb[0].mxu0
    %v918 = vpop.f32.mrb[0].mxu0
    %v919 = vadd.f32 0.0, %v918
    %v920 = vpop.f32.mrb[0].mxu0
    %921 = vdwg.mxu0
    %v922 = vmul.f32 %v892, %v598
    %v923 = vmul.f32 %v895, %v598
    %v924 = vmul.f32 %v900, %v602
    %v925 = vmul.f32 %v903, %v602
    %v926 = vmul.f32 %v908, %v606
    %v927 = vmul.f32 %v911, %v606
    %v928 = vmul.f32 %v916, %v610
    %v929 = vmul.f32 %v919, %v610
    %v930 = vsel %vm217, %v922, 0.0
    %v931 = vsel %vm217, %v924, 0.0
    %v932 = vadd.f32 %v930, %v931
    %v933 = vsel %vm217, %v926, 0.0
    %v934 = vadd.f32 %v932, %v933
    %v935 = vsel %vm217, %v928, 0.0
    %v936 = vadd.f32 %v934, %v935
    %v937 = vsel %vm217, %v923, 0.0
    %v938 = vsel %vm217, %v925, 0.0
    %v939 = vadd.f32 %v937, %v938
    %v940 = vsel %vm217, %v927, 0.0
    %v941 = vadd.f32 %v939, %v940
    %v942 = vsel %vm217, %v929, 0.0
    %v943 = vadd.f32 %v941, %v942
    %944 = vst.msk [vmem:[#allocation2 + $0x10] sm:$0xff] %vm217, %v936
    %945 = vst.msk [vmem:[#allocation2 + $0x18] sm:$0xff] %vm217, %v943
    %v946 = vld [vmem:[#allocation2] sm:$0xff]
    %v947 = vld [vmem:[#allocation2 + $0x8] sm:$0xff]
    %v948 = vld [vmem:[#allocation2 + $0x10] sm:$0xff]
    %v949 = vld [vmem:[#allocation2 + $0x18] sm:$0xff]
    %v950 = vpack.c.bf16 %v947, %v946
    %v951 = vpack.c.bf16 %v949, %v948
    %v952 = vld [vmem:[#allocation10] sm:$0xf]
    %v953 = vld [vmem:[#allocation10 + $0x4] sm:$0xf]
    %v954 = vld [vmem:[#allocation10 + $0x8] sm:$0xf]
    %v955 = vld [vmem:[#allocation10 + $0xc] sm:$0xf]
    %v956 = vld [vmem:[#allocation11] sm:$0x1]
    %v958 = vlaneseq
    %v959 = vshrl.u32 %v958, 7
    %v960 = vsub.s32 0, %v959
    %v961 = vrot.slane %v956, %v960
    %v967 = vunpack.c.l.b16 %v952
    %v968 = vunpack.c.l.b16 %v953
    %v969 = vunpack.c.l.b16 %v954
    %v970 = vunpack.c.l.b16 %v955
    %v971 = vpack.c.b16 %v968, %v967
    %v972 = vpack.c.b16 %v970, %v969
    %v976 = vsel %vm217, %v950, 0
    %v979 = vsel %vm217, %v951, 0
    %981 = vmatprep.subr.bf16.mxu0 0
    %982 = vmatpush1.bf16.msra.mxu0 %v971
    %983 = vmatprep.subr.bf16.mxu0 0
    %984 = vmatpush1.bf16.msra.mxu0 %v972
    %985 = vmatprep.subr.bf16.mxu0 0
    %986 = vmatpush1.bf16.msra.mxu0 0
    %987 = vmatprep.subr.bf16.mxu0 0
    %988 = vmatpush1.bf16.msra.mxu0 0
    %989 = vmatprep.subr.bf16.mxu0 0
    %990 = vmatpush1.bf16.msra.mxu0 0
    %991 = vmatprep.subr.bf16.mxu0 0
    %992 = vmatpush1.bf16.msra.mxu0 0
    %993 = vmatprep.subr.bf16.mxu0 0
    %994 = vmatpush1.bf16.msra.mxu0 0
    %995 = vmatprep.subr.bf16.mxu0 0
    %996 = vmatpush1.bf16.msra.mxu0 0
    %997 = vmatprep.subr.bf16.mxu0 0
    %998 = vmatpush1.bf16.msra.mxu0 0
    %999 = vmatprep.subr.bf16.mxu0 0
    %1000 = vmatpush1.bf16.msra.mxu0 0
    %1001 = vmatprep.subr.bf16.mxu0 0
    %1002 = vmatpush1.bf16.msra.mxu0 0
    %1003 = vmatprep.subr.bf16.mxu0 0
    %1004 = vmatpush1.bf16.msra.mxu0 0
    %1005 = vmatprep.subr.bf16.mxu0 0
    %1006 = vmatpush1.bf16.msra.mxu0 0
    %1007 = vmatprep.subr.bf16.mxu0 0
    %1008 = vmatpush1.bf16.msra.mxu0 0
    %1009 = vmatprep.subr.bf16.mxu0 0
    %1010 = vmatpush1.bf16.msra.mxu0 0
    %1011 = vmatprep.subr.bf16.mxu0 0
    %1012 = vmatpush1.bf16.msra.mxu0 0
    %1013 = vmatprep.mubr.bf16.mxu0 0
    %1014 = vmatmul.mubr.bf16.gmra.mrb[0].mxu0 %v976
    %v1015 = vpop.f32.mrb[0].mxu0
    %v1016 = vadd.f32 %v961, %v1015
    %v1017 = vpop.f32.mrb[0].mxu0
    %v1018 = vpop.f32.mrb[0].mxu0
    %v1019 = vadd.f32 %v961, %v1018
    %v1020 = vpop.f32.mrb[0].mxu0
    %1021 = vmatprep.mubr.bf16.mxu0 0
    %1022 = vmatmul.mubr.bf16.gmra.mrb[0].mxu0 %v979
    %v1023 = vpop.f32.mrb[0].mxu0
    %v1024 = vadd.f32 %v961, %v1023
    %v1025 = vpop.f32.mrb[0].mxu0
    %v1026 = vpop.f32.mrb[0].mxu0
    %v1027 = vadd.f32 %v961, %v1026
    %v1028 = vpop.f32.mrb[0].mxu0
    %1029 = vdwg.mxu0
    %v1030 = vadd.f32 %v188, %v1016
    %v1031 = vadd.f32 %v189, %v1019
    %v1032 = vadd.f32 %v190, %v1024
    %v1033 = vadd.f32 %v191, %v1027
    %v1034 = vld [vmem:[%s8] sm:$0x1]
    %v1035 = vld [vmem:[%s9] sm:$0x1]
    %v1036 = vsel %vm217, %v1030, 0.0
    %1037 = vadd.xlane.f32.xlu0 %v1036
    %v1038 = vpop.xlane.xlu0 %1037
    %v1039 = vsel %vm217, %v1031, 0.0
    %1040 = vadd.xlane.f32.xlu0 %v1039
    %v1041 = vpop.xlane.xlu0 %1040
    %v1042 = vsel %vm217, %v1032, 0.0
    %1043 = vadd.xlane.f32.xlu0 %v1042
    %v1044 = vpop.xlane.xlu0 %1043
    %v1045 = vsel %vm217, %v1033, 0.0
    %1046 = vadd.xlane.f32.xlu0 %v1045
    %v1047 = vpop.xlane.xlu0 %1046
    %v1048 = vrcp.pop 32.0
    %v1049 = vmul.f32 %v1038, %v1048
    %v1050 = vmul.f32 %v1041, %v1048
    %v1051 = vmul.f32 %v1044, %v1048
    %v1052 = vmul.f32 %v1047, %v1048
    %v1053 = vsub.f32 %v1030, %v1049
    %v1054 = vsub.f32 %v1031, %v1050
    %v1055 = vsub.f32 %v1032, %v1051
    %v1056 = vsub.f32 %v1033, %v1052
    %v1057 = vmul.f32 %v1053, %v1053
    %v1058 = vmul.f32 %v1054, %v1054
    %v1059 = vmul.f32 %v1055, %v1055
    %v1060 = vmul.f32 %v1056, %v1056
    %v1061 = vsel %vm217, %v1057, 0.0
    %1062 = vadd.xlane.f32.xlu0 %v1061
    %v1063 = vpop.xlane.xlu0 %1062
    %v1064 = vsel %vm217, %v1058, 0.0
    %1065 = vadd.xlane.f32.xlu0 %v1064
    %v1066 = vpop.xlane.xlu0 %1065
    %v1067 = vsel %vm217, %v1059, 0.0
    %1068 = vadd.xlane.f32.xlu0 %v1067
    %v1069 = vpop.xlane.xlu0 %1068
    %v1070 = vsel %vm217, %v1060, 0.0
    %1071 = vadd.xlane.f32.xlu0 %v1070
    %v1072 = vpop.xlane.xlu0 %1071
    %v1073 = vmul.f32 %v1063, %v1048
    %v1074 = vmul.f32 %v1066, %v1048
    %v1075 = vmul.f32 %v1069, %v1048
    %v1076 = vmul.f32 %v1072, %v1048
    %v1077 = vadd.f32 %v1073, 1e-05
    %v1078 = vadd.f32 %v1074, 1e-05
    %v1079 = vadd.f32 %v1075, 1e-05
    %v1080 = vadd.f32 %v1076, 1e-05
    %v1081 = vrsqrt.pop %v1077
    %v1082 = vrsqrt.pop %v1078
    %v1083 = vrsqrt.pop %v1079
    %v1084 = vrsqrt.pop %v1080
    %v1085 = vmul.f32 %v1053, %v1081
    %v1086 = vmul.f32 %v1054, %v1082
    %v1087 = vmul.f32 %v1055, %v1083
    %v1088 = vmul.f32 %v1056, %v1084
    %v1090 = vlaneseq
    %v1091 = vshrl.u32 %v1090, 7
    %v1092 = vsub.s32 0, %v1091
    %v1093 = vrot.slane %v1034, %v1092
    %v1095 = vmul.f32 %v1085, %v1093
    %v1096 = vmul.f32 %v1086, %v1093
    %v1097 = vmul.f32 %v1087, %v1093
    %v1098 = vmul.f32 %v1088, %v1093
    %v1100 = vlaneseq
    %v1101 = vshrl.u32 %v1100, 7
    %v1102 = vsub.s32 0, %v1101
    %v1103 = vrot.slane %v1035, %v1102
    %v1105 = vadd.f32 %v1095, %v1103
    %v1106 = vadd.f32 %v1096, %v1103
    %v1107 = vadd.f32 %v1097, %v1103
    %v1108 = vadd.f32 %v1098, %v1103
    %v1109 = vpack.c.bf16 %v1106, %v1105
    %v1110 = vpack.c.bf16 %v1108, %v1107
    %v1111 = vld [vmem:[#allocation13] sm:$0xf]
    %v1112 = vld [vmem:[#allocation13 + $0x4] sm:$0xf]
    %v1113 = vld [vmem:[#allocation13 + $0x8] sm:$0xf]
    %v1114 = vld [vmem:[#allocation13 + $0xc] sm:$0xf]
    %v1115 = vld [vmem:[%s11] sm:$0x1]
    %v1117 = vlaneseq
    %v1118 = vshrl.u32 %v1117, 7
    %v1119 = vsub.s32 0, %v1118
    %v1120 = vrot.slane %v1115, %v1119
    %v1126 = vunpack.c.l.b16 %v1111
    %v1127 = vunpack.c.l.b16 %v1112
    %v1128 = vunpack.c.l.b16 %v1113
    %v1129 = vunpack.c.l.b16 %v1114
    %v1130 = vpack.c.b16 %v1127, %v1126
    %v1131 = vpack.c.b16 %v1129, %v1128
    %v1135 = vsel %vm217, %v1109, 0
    %v1138 = vsel %vm217, %v1110, 0
    %1140 = vmatprep.subr.bf16.mxu0 0
    %1141 = vmatpush1.bf16.msra.mxu0 %v1130
    %1142 = vmatprep.subr.bf16.mxu0 0
    %1143 = vmatpush1.bf16.msra.mxu0 %v1131
    %1144 = vmatprep.subr.bf16.mxu0 0
    %1145 = vmatpush1.bf16.msra.mxu0 0
    %1146 = vmatprep.subr.bf16.mxu0 0
    %1147 = vmatpush1.bf16.msra.mxu0 0
    %1148 = vmatprep.subr.bf16.mxu0 0
    %1149 = vmatpush1.bf16.msra.mxu0 0
    %1150 = vmatprep.subr.bf16.mxu0 0
    %1151 = vmatpush1.bf16.msra.mxu0 0
    %1152 = vmatprep.subr.bf16.mxu0 0
    %1153 = vmatpush1.bf16.msra.mxu0 0
    %1154 = vmatprep.subr.bf16.mxu0 0
    %1155 = vmatpush1.bf16.msra.mxu0 0
    %1156 = vmatprep.subr.bf16.mxu0 0
    %1157 = vmatpush1.bf16.msra.mxu0 0
    %1158 = vmatprep.subr.bf16.mxu0 0
    %1159 = vmatpush1.bf16.msra.mxu0 0
    %1160 = vmatprep.subr.bf16.mxu0 0
    %1161 = vmatpush1.bf16.msra.mxu0 0
    %1162 = vmatprep.subr.bf16.mxu0 0
    %1163 = vmatpush1.bf16.msra.mxu0 0
    %1164 = vmatprep.subr.bf16.mxu0 0
    %1165 = vmatpush1.bf16.msra.mxu0 0
    %1166 = vmatprep.subr.bf16.mxu0 0
    %1167 = vmatpush1.bf16.msra.mxu0 0
    %1168 = vmatprep.subr.bf16.mxu0 0
    %1169 = vmatpush1.bf16.msra.mxu0 0
    %1170 = vmatprep.subr.bf16.mxu0 0
    %1171 = vmatpush1.bf16.msra.mxu0 0
    %1172 = vmatprep.mubr.bf16.mxu0 0
    %1173 = vmatmul.mubr.bf16.gmra.mrb[0].mxu0 %v1135
    %v1174 = vpop.f32.mrb[0].mxu0
    %v1175 = vadd.f32 %v1120, %v1174
    %v1176 = vpop.f32.mrb[0].mxu0
    %v1177 = vpop.f32.mrb[0].mxu0
    %v1178 = vadd.f32 %v1120, %v1177
    %v1179 = vpop.f32.mrb[0].mxu0
    %1180 = vmatprep.mubr.bf16.mxu0 0
    %1181 = vmatmul.mubr.bf16.gmra.mrb[0].mxu0 %v1138
    %v1182 = vpop.f32.mrb[0].mxu0
    %v1183 = vadd.f32 %v1120, %v1182
    %v1184 = vpop.f32.mrb[0].mxu0
    %v1185 = vpop.f32.mrb[0].mxu0
    %v1186 = vadd.f32 %v1120, %v1185
    %v1187 = vpop.f32.mrb[0].mxu0
    %1188 = vdwg.mxu0
    %v1189 = vmax.f32 %v1175, 0.0
    %v1190 = vmax.f32 %v1178, 0.0
    %v1191 = vmax.f32 %v1183, 0.0
    %v1192 = vmax.f32 %v1186, 0.0
    %v1193 = vpack.c.bf16 %v1190, %v1189
    %v1194 = vpack.c.bf16 %v1192, %v1191
    %v1195 = vld [vmem:[%s12] sm:$0xf]
    %v1196 = vld [vmem:[%s12 + $0x4] sm:$0xf]
    %v1197 = vld [vmem:[%s12 + $0x8] sm:$0xf]
    %v1198 = vld [vmem:[%s12 + $0xc] sm:$0xf]
    %v1199 = vld [vmem:[%s12 + $0x10] sm:$0xf]
    %v1200 = vld [vmem:[%s12 + $0x14] sm:$0xf]
    %v1201 = vld [vmem:[%s12 + $0x18] sm:$0xf]
    %v1202 = vld [vmem:[%s12 + $0x1c] sm:$0xf]
    %v1203 = vld [vmem:[%s13] sm:$0x1]
    %v1205 = vlaneseq
    %v1206 = vshrl.u32 %v1205, 7
    %v1207 = vsub.s32 0, %v1206
    %v1208 = vrot.slane %v1203, %v1207
    %v1218 = vunpack.c.l.b16 %v1195
    %v1219 = vunpack.c.l.b16 %v1196
    %v1220 = vunpack.c.l.b16 %v1197
    %v1221 = vunpack.c.l.b16 %v1198
    %v1222 = vunpack.c.l.b16 %v1199
    %v1223 = vunpack.c.l.b16 %v1200
    %v1224 = vunpack.c.l.b16 %v1201
    %v1225 = vunpack.c.l.b16 %v1202
    %v1226 = vpack.c.b16 %v1219, %v1218
    %v1227 = vpack.c.b16 %v1221, %v1220
    %v1228 = vpack.c.b16 %v1223, %v1222
    %v1229 = vpack.c.b16 %v1225, %v1224
    %vm1234 = vcmask 523264
    %v1236 = vsel %vm1234, %v1193, 0
    %v1239 = vsel %vm1234, %v1194, 0
    %1241 = vmatprep.subr.bf16.mxu0 0
    %1242 = vmatpush1.bf16.msra.mxu0 %v1226
    %1243 = vmatprep.subr.bf16.mxu0 0
    %1244 = vmatpush1.bf16.msra.mxu0 %v1227
    %1245 = vmatprep.subr.bf16.mxu0 0
    %1246 = vmatpush1.bf16.msra.mxu0 %v1228
    %1247 = vmatprep.subr.bf16.mxu0 0
    %1248 = vmatpush1.bf16.msra.mxu0 %v1229
    %1249 = vmatprep.subr.bf16.mxu0 0
    %1250 = vmatpush1.bf16.msra.mxu0 0
    %1251 = vmatprep.subr.bf16.mxu0 0
    %1252 = vmatpush1.bf16.msra.mxu0 0
    %1253 = vmatprep.subr.bf16.mxu0 0
    %1254 = vmatpush1.bf16.msra.mxu0 0
    %1255 = vmatprep.subr.bf16.mxu0 0
    %1256 = vmatpush1.bf16.msra.mxu0 0
    %1257 = vmatprep.subr.bf16.mxu0 0
    %1258 = vmatpush1.bf16.msra.mxu0 0
    %1259 = vmatprep.subr.bf16.mxu0 0
    %1260 = vmatpush1.bf16.msra.mxu0 0
    %1261 = vmatprep.subr.bf16.mxu0 0
    %1262 = vmatpush1.bf16.msra.mxu0 0
    %1263 = vmatprep.subr.bf16.mxu0 0
    %1264 = vmatpush1.bf16.msra.mxu0 0
    %1265 = vmatprep.subr.bf16.mxu0 0
    %1266 = vmatpush1.bf16.msra.mxu0 0
    %1267 = vmatprep.subr.bf16.mxu0 0
    %1268 = vmatpush1.bf16.msra.mxu0 0
    %1269 = vmatprep.subr.bf16.mxu0 0
    %1270 = vmatpush1.bf16.msra.mxu0 0
    %1271 = vmatprep.subr.bf16.mxu0 0
    %1272 = vmatpush1.bf16.msra.mxu0 0
    %1273 = vmatprep.mubr.bf16.mxu0 0
    %1274 = vmatmul.mubr.bf16.gmra.mrb[0].mxu0 %v1236
    %v1275 = vpop.f32.mrb[0].mxu0
    %v1276 = vadd.f32 %v1208, %v1275
    %v1277 = vpop.f32.mrb[0].mxu0
    %v1278 = vpop.f32.mrb[0].mxu0
    %v1279 = vadd.f32 %v1208, %v1278
    %v1280 = vpop.f32.mrb[0].mxu0
    %1281 = vmatprep.mubr.bf16.mxu0 0
    %1282 = vmatmul.mubr.bf16.gmra.mrb[0].mxu0 %v1239
    %v1283 = vpop.f32.mrb[0].mxu0
    %v1284 = vadd.f32 %v1208, %v1283
    %v1285 = vpop.f32.mrb[0].mxu0
    %v1286 = vpop.f32.mrb[0].mxu0
    %v1287 = vadd.f32 %v1208, %v1286
    %v1288 = vpop.f32.mrb[0].mxu0
    %1289 = vdwg.mxu0
    %v1290 = vadd.f32 %v1105, %v1276
    %v1291 = vadd.f32 %v1106, %v1279
    %v1292 = vadd.f32 %v1107, %v1284
    %v1293 = vadd.f32 %v1108, %v1287
    %v1294 = vld [vmem:[%s14] sm:$0x1]
    %v1295 = vld [vmem:[%s15] sm:$0x1]
    %v1296 = vsel %vm217, %v1290, 0.0
    %1297 = vadd.xlane.f32.xlu0 %v1296
    %v1298 = vpop.xlane.xlu0 %1297
    %v1299 = vsel %vm217, %v1291, 0.0
    %1300 = vadd.xlane.f32.xlu0 %v1299
    %v1301 = vpop.xlane.xlu0 %1300
    %v1302 = vsel %vm217, %v1292, 0.0
    %1303 = vadd.xlane.f32.xlu0 %v1302
    %v1304 = vpop.xlane.xlu0 %1303
    %v1305 = vsel %vm217, %v1293, 0.0
    %1306 = vadd.xlane.f32.xlu0 %v1305
    %v1307 = vpop.xlane.xlu0 %1306
    %v1308 = vmul.f32 %v1298, %v1048
    %v1309 = vmul.f32 %v1301, %v1048
    %v1310 = vmul.f32 %v1304, %v1048
    %v1311 = vmul.f32 %v1307, %v1048
    %v1312 = vsub.f32 %v1290, %v1308
    %v1313 = vsub.f32 %v1291, %v1309
    %v1314 = vsub.f32 %v1292, %v1310
    %v1315 = vsub.f32 %v1293, %v1311
    %v1316 = vmul.f32 %v1312, %v1312
    %v1317 = vmul.f32 %v1313, %v1313
    %v1318 = vmul.f32 %v1314, %v1314
    %v1319 = vmul.f32 %v1315, %v1315
    %v1320 = vsel %vm217, %v1316, 0.0
    %1321 = vadd.xlane.f32.xlu0 %v1320
    %v1322 = vpop.xlane.xlu0 %1321
    %v1323 = vsel %vm217, %v1317, 0.0
    %1324 = vadd.xlane.f32.xlu0 %v1323
    %v1325 = vpop.xlane.xlu0 %1324
    %v1326 = vsel %vm217, %v1318, 0.0
    %1327 = vadd.xlane.f32.xlu0 %v1326
    %v1328 = vpop.xlane.xlu0 %1327
    %v1329 = vsel %vm217, %v1319, 0.0
    %1330 = vadd.xlane.f32.xlu0 %v1329
    %v1331 = vpop.xlane.xlu0 %1330
    %v1332 = vmul.f32 %v1322, %v1048
    %v1333 = vmul.f32 %v1325, %v1048
    %v1334 = vmul.f32 %v1328, %v1048
    %v1335 = vmul.f32 %v1331, %v1048
    %v1336 = vadd.f32 %v1332, 1e-05
    %v1337 = vadd.f32 %v1333, 1e-05
    %v1338 = vadd.f32 %v1334, 1e-05
    %v1339 = vadd.f32 %v1335, 1e-05
    %v1340 = vrsqrt.pop %v1336
    %v1341 = vrsqrt.pop %v1337
    %v1342 = vrsqrt.pop %v1338
    %v1343 = vrsqrt.pop %v1339
    %v1344 = vmul.f32 %v1312, %v1340
    %v1345 = vmul.f32 %v1313, %v1341
    %v1346 = vmul.f32 %v1314, %v1342
    %v1347 = vmul.f32 %v1315, %v1343
    %v1349 = vlaneseq
    %v1350 = vshrl.u32 %v1349, 7
    %v1351 = vsub.s32 0, %v1350
    %v1352 = vrot.slane %v1294, %v1351
    %v1354 = vmul.f32 %v1344, %v1352
    %v1355 = vmul.f32 %v1345, %v1352
    %v1356 = vmul.f32 %v1346, %v1352
    %v1357 = vmul.f32 %v1347, %v1352
    %v1359 = vlaneseq
    %v1360 = vshrl.u32 %v1359, 7
    %v1361 = vsub.s32 0, %v1360
    %v1362 = vrot.slane %v1295, %v1361
    %v1364 = vadd.f32 %v1354, %v1362
    %v1365 = vadd.f32 %v1355, %v1362
    %v1366 = vadd.f32 %v1356, %v1362
    %v1367 = vadd.f32 %v1357, %v1362
    %1368 = vst.msk [vmem:[#allocation14] sm:$0xff] %vm217, %v1364
    %1369 = vst.msk [vmem:[#allocation14 + $0x8] sm:$0xff] %vm217, %v1365
    %1370 = vst.msk [vmem:[#allocation14 + $0x10] sm:$0xff] %vm217, %v1366
    %1371 = vst.msk [vmem:[#allocation14 + $0x18] sm:$0xff] %vm217, %v1367
    %v1372 = vpack.c.bf16 %v1365, %v1364
    %v1373 = vpack.c.bf16 %v1367, %v1366
    %v1374 = vld [vmem:[%s16] sm:$0xf]
    %v1375 = vld [vmem:[%s16 + $0x4] sm:$0xf]
    %v1376 = vld [vmem:[%s16 + $0x8] sm:$0xf]
    %v1377 = vld [vmem:[%s16 + $0xc] sm:$0xf]
    %v1378 = vld [vmem:[%s17] sm:$0x1]
    %v1380 = vlaneseq
    %v1381 = vshrl.u32 %v1380, 7
    %v1382 = vsub.s32 0, %v1381
    %v1383 = vrot.slane %v1378, %v1382
    %v1389 = vunpack.c.l.b16 %v1374
    %v1390 = vunpack.c.l.b16 %v1375
    %v1391 = vunpack.c.l.b16 %v1376
    %v1392 = vunpack.c.l.b16 %v1377
    %v1393 = vpack.c.b16 %v1390, %v1389
    %v1394 = vpack.c.b16 %v1392, %v1391
    %v1398 = vsel %vm217, %v1372, 0
    %v1401 = vsel %vm217, %v1373, 0
    %1403 = vmatprep.subr.bf16.mxu0 0
    %1404 = vmatpush1.bf16.msra.mxu0 %v1393
    %1405 = vmatprep.subr.bf16.mxu0 0
    %1406 = vmatpush1.bf16.msra.mxu0 %v1394
    %1407 = vmatprep.subr.bf16.mxu0 0
    %1408 = vmatpush1.bf16.msra.mxu0 0
    %1409 = vmatprep.subr.bf16.mxu0 0
    %1410 = vmatpush1.bf16.msra.mxu0 0
    %1411 = vmatprep.subr.bf16.mxu0 0
    %1412 = vmatpush1.bf16.msra.mxu0 0
    %1413 = vmatprep.subr.bf16.mxu0 0
    %1414 = vmatpush1.bf16.msra.mxu0 0
    %1415 = vmatprep.subr.bf16.mxu0 0
    %1416 = vmatpush1.bf16.msra.mxu0 0
    %1417 = vmatprep.subr.bf16.mxu0 0
    %1418 = vmatpush1.bf16.msra.mxu0 0
    %1419 = vmatprep.subr.bf16.mxu0 0
    %1420 = vmatpush1.bf16.msra.mxu0 0
    %1421 = vmatprep.subr.bf16.mxu0 0
    %1422 = vmatpush1.bf16.msra.mxu0 0
    %1423 = vmatprep.subr.bf16.mxu0 0
    %1424 = vmatpush1.bf16.msra.mxu0 0
    %1425 = vmatprep.subr.bf16.mxu0 0
    %1426 = vmatpush1.bf16.msra.mxu0 0
    %1427 = vmatprep.subr.bf16.mxu0 0
    %1428 = vmatpush1.bf16.msra.mxu0 0
    %1429 = vmatprep.subr.bf16.mxu0 0
    %1430 = vmatpush1.bf16.msra.mxu0 0
    %1431 = vmatprep.subr.bf16.mxu0 0
    %1432 = vmatpush1.bf16.msra.mxu0 0
    %1433 = vmatprep.subr.bf16.mxu0 0
    %1434 = vmatpush1.bf16.msra.mxu0 0
    %1435 = vmatprep.mubr.bf16.mxu0 0
    %1436 = vmatmul.mubr.bf16.gmra.mrb[0].mxu0 %v1398
    %v1437 = vpop.f32.mrb[0].mxu0
    %v1438 = vpop.f32.mrb[0].mxu0
    %v1439 = vpop.f32.mrb[0].mxu0
    %v1440 = vadd.f32 %v1383, %v1439
    %v1441 = vpop.f32.mrb[0].mxu0
    %1442 = vmatprep.mubr.bf16.mxu0 0
    %1443 = vmatmul.mubr.bf16.gmra.mrb[0].mxu0 %v1401
    %v1444 = vpop.f32.mrb[0].mxu0
    %v1445 = vpop.f32.mrb[0].mxu0
    %v1446 = vpop.f32.mrb[0].mxu0
    %v1447 = vadd.f32 %v1383, %v1446
    %v1448 = vpop.f32.mrb[0].mxu0
    %1449 = vdwg.mxu0
    %1450 = vst [vmem:[#allocation15] sm:$0xff] %v1440
    %1451 = vst [vmem:[#allocation15 + $0x8] sm:$0xff] %v1447
    // Predicated region
    $region98: #{tpu_custom_call.1} parent=1 // pred_check
      _
    $region99: #{tpu_custom_call.1} parent=1 // pred_check_branch
      %1453 = sbr.rel (0) target = $region101
    $region100: #{tpu_custom_call.1} parent=1 // pred_region
      %s1455 = ssub.s32 512, 512
      %1456 = vsyncadd [#allocation5], %s1455
      %s1457 = sshll.u32 [#allocation14], 4
      %s1458 = int_to_ptr.vmem [resolvable:$true] %s1457
      %1463 = dma.vmem_to_hbm [thread:$0]  %s1458, 512, %s18, [#allocation5], 128, 128, 8
    $region101: #{tpu_custom_call.1} parent=1 // pred_fallthru
      _
    // Predicated region
    $region102: #{tpu_custom_call.1} parent=1 // pred_check
      _
    $region103: #{tpu_custom_call.1} parent=1 // pred_check_branch
      %1465 = sbr.rel (0) target = $region105
    $region104: #{tpu_custom_call.1} parent=1 // pred_region
      %s1467 = ssub.s32 256, 256
      %1468 = vsyncadd [#allocation16], %s1467
      %s1469 = sshll.u32 [#allocation15], 4
      %s1470 = int_to_ptr.vmem [resolvable:$true] %s1469
      %1475 = dma.vmem_to_hbm [thread:$0]  %s1470, 256, %s19, [#allocation16], 128, 128, 8
    $region105: #{tpu_custom_call.1} parent=1 // pred_fallthru
      _
    // Predicated region
    $region106: #{tpu_custom_call.1} parent=1 // pred_check
      _
    $region107: #{tpu_custom_call.1} parent=1 // pred_check_branch
      %1477 = sbr.rel (0) target = $region109
    $region108: #{tpu_custom_call.1} parent=1 // pred_region
      %s1479 = ssub.s32 512, 512
      %1480 = vsyncadd [#allocation16], %s1479
      %s1481 = sshll.u32 [#allocation17], 4
      %s1482 = int_to_ptr.vmem [resolvable:$true] %s1481
      %1487 = dma.vmem_to_hbm [thread:$0]  %s1482, 512, %s20, [#allocation16], 128, 128, 8
    $region109: #{tpu_custom_call.1} parent=1 // pred_fallthru
      _
    // Predicated region
    $region110: #{tpu_custom_call.1} parent=1 // pred_check
      _
    $region111: #{tpu_custom_call.1} parent=1 // pred_check_branch
      %1489 = sbr.rel (0) target = $region113
    $region112: #{tpu_custom_call.1} parent=1 // pred_region
      %1490 = dma.done [#allocation5], 512
    $region113: #{tpu_custom_call.1} parent=1 // pred_fallthru
      _
    // Predicated region
    $region114: #{tpu_custom_call.1} parent=1 // pred_check
      _
    $region115: #{tpu_custom_call.1} parent=1 // pred_check_branch
      %1492 = sbr.rel (0) target = $region117
    $region116: #{tpu_custom_call.1} parent=1 // pred_region
      %1493 = dma.done [#allocation16], 256
    $region117: #{tpu_custom_call.1} parent=1 // pred_fallthru
      _
    // Predicated region
    $region118: #{tpu_custom_call.1} parent=1 // pred_check
      _
    $region119: #{tpu_custom_call.1} parent=1 // pred_check_branch
      %1495 = sbr.rel (0) target = $region121
    $region120: #{tpu_custom_call.1} parent=1 // pred_region
      %1496 = dma.done [#allocation16], 512
    $region121: #{tpu_custom_call.1} parent=1 // pred_fallthru
      _
    %1497 = vsyncpa [#allocation4], 1
    %1498 = vsyncpa [#allocation9], 1
    %1499 = vsyncpa [#allocation12], 1
    %1500 = vsyncpa [#allocation5], 1
    %1501 = vsyncpa [#allocation16], 1
    %1502 = vsyncpa [#allocation6], 1

</llo_original>
